<compile_context>
chip_gen: v7x
topology: tpu7x:2x2x1
jax: 0.10.0
libtpu: 0.0.40
codegen_flags: <defaults>
</compile_context>

<pallas_src>
import numpy as np
import jax
import jax.numpy as jnp
from jax.experimental import pallas as pl
from jax.experimental.pallas import tpu as pltpu


# ----------------------------- schedule (glue) ------------------------------
def linear_beta_schedule(timesteps):
    scale = 1000.0 / timesteps
    beta_start = scale * 1e-4
    beta_end = scale * 0.02
    return np.linspace(beta_start, beta_end, timesteps, dtype=np.float64)


# ------------------------------ fused Pallas kernel -------------------------
def _fused_distill_kernel(coef_ref,                       # (B, 9) f32, SMEM (scalar prefetch)
                          x_ref, noise_ref,               # (1, C, HW) each
                          wc_ref, bc_ref,                 # (Cc, C), (Cc, 1)
                          w1x_ref, w1c_ref, b1_ref,       # (Hd, C), (Hd, Cc), (Hd, 1)
                          wt_ref, bt_ref,                 # (Hd, 1), (Hd, 1)
                          w2_ref, b2_ref,                 # (C, Hd), (C, 1)
                          loss_ref):                      # (1, 1, 128)
    b = pl.program_id(0)

    x = x_ref[0]          # (C, HW)   lane-dense
    nz = noise_ref[0]     # (C, HW)

    # per-batch scalar coefficients (SMEM reads)
    a = coef_ref[b, 0]          # sqrt_alphas_cumprod[t]
    s = coef_ref[b, 1]          # sqrt_one_minus_alphas_cumprod[t]
    cr = coef_ref[b, 2]         # sqrt_recip_alphas_cumprod[t]
    crm1 = coef_ref[b, 3]       # sqrt_recipm1_alphas_cumprod[t]
    cprev = coef_ref[b, 4]      # sqrt_alphas_cumprod_prev[t]
    comp = coef_ref[b, 5]       # sqrt(1 - alphas_cumprod_prev[t])   (eta = 0)
    t_s = coef_ref[b, 6]        # sampled_t / num_timesteps   (student)
    t_ddim = coef_ref[b, 7]     # index[t]  / num_timesteps   (teacher DDIM)
    t_tgt = coef_ref[b, 8]      # tidx2train[t-1] / num_timesteps   (teacher target)

    # ---- context_fn (1x1 conv + ReLU), no-grad in the reference ----
    ctx = jnp.maximum(
        jnp.dot(wc_ref[...], x, preferred_element_type=jnp.float32) + bc_ref[...],
        0.0)                                                       # (Cc, HW)

    # ---- q_sample: x_noisy = sqrt_ac[t] * x_start + sqrt_1m_ac[t] * noise ----
    x_noisy = a * x + s * nz                                       # (C, HW)

    # first-layer context term + folded bias, shared by all three denoise calls
    h_ctx = jnp.dot(w1c_ref[...], ctx, preferred_element_type=jnp.float32)  # (Hd, HW)
    b1bt = b1_ref[...] + bt_ref[...]                               # (Hd, 1)
    wt = wt_ref[...]                                               # (Hd, 1)
    w1x = w1x_ref[...]
    w2 = w2_ref[...]
    b2 = b2_ref[...]

    def denoise(x_in, t01):
        # per-pixel MLP: relu(W1x@x + W1c@ctx + b1 + temb(t01)) ; out = W2@h + b2
        h = (jnp.dot(w1x, x_in, preferred_element_type=jnp.float32)
             + h_ctx + b1bt + t01 * wt)
        h = jnp.maximum(h, 0.0)
        return jnp.dot(w2, h, preferred_element_type=jnp.float32) + b2

    fx = denoise(x_noisy, t_s)        # student_fn prediction
    eps = denoise(x_noisy, t_ddim)    # denoise_fn (teacher) eps for DDIM step

    # ---- teacher DDIM step: pred_mode='noise', clip_denoised=True, eta=0 ----
    x_recon = jnp.clip(cr * x_noisy - crm1 * eps, -1.0, 1.0)
    x_next = cprev * x_recon + comp * eps

    target = denoise(x_next, t_tgt)   # denoise_fn target at previous timestep

    # ---- per-batch L1:  torch F.l1_loss(...).mean(dim=(1,2,3)) ----
    l1 = jnp.mean(jnp.abs(target - fx))
    loss_ref[...] = jnp.full((1, 1, 128), l1, dtype=jnp.float32)   # lane-dense store


def fused_forward(coef, x, noise, p):
    """coef: (B,9) f32, x/noise: (B, C, HW) f32. Returns per-batch L1, shape (B,)."""
    B, C, HW = x.shape
    Cc = p["wc"].shape[0]
    Hd = p["w1x"].shape[0]

    out = pl.pallas_call(
        _fused_distill_kernel,
        out_shape=jax.ShapeDtypeStruct((B, 1, 128), jnp.float32),
        grid_spec=pltpu.PrefetchScalarGridSpec(
            num_scalar_prefetch=1,
            grid=(B,),
            in_specs=[
                pl.BlockSpec((1, C, HW), lambda b, coef: (b, 0, 0)),   # x
                pl.BlockSpec((1, C, HW), lambda b, coef: (b, 0, 0)),   # noise
                pl.BlockSpec((Cc, C), lambda b, coef: (0, 0)),         # wc
                pl.BlockSpec((Cc, 1), lambda b, coef: (0, 0)),         # bc
                pl.BlockSpec((Hd, C), lambda b, coef: (0, 0)),         # w1x
                pl.BlockSpec((Hd, Cc), lambda b, coef: (0, 0)),        # w1c
                pl.BlockSpec((Hd, 1), lambda b, coef: (0, 0)),         # b1
                pl.BlockSpec((Hd, 1), lambda b, coef: (0, 0)),         # wt
                pl.BlockSpec((Hd, 1), lambda b, coef: (0, 0)),         # bt
                pl.BlockSpec((C, Hd), lambda b, coef: (0, 0)),         # w2
                pl.BlockSpec((C, 1), lambda b, coef: (0, 0)),          # b2
            ],
            out_specs=pl.BlockSpec((1, 1, 128), lambda b, coef: (b, 0, 0)),
        ),
        compiler_params=pltpu.CompilerParams(
            dimension_semantics=("parallel",)),   # one image per TensorCore on v7x
    )(coef, x, noise,
      p["wc"], p["bc"], p["w1x"], p["w1c"], p["b1"],
      p["wt"], p["bt"], p["w2"], p["b2"])
    return out[:, 0, 0]


# ----------------------------- forward (module) -----------------------------
def init_params(key, C, Cc, hidden):
    """Weights stored pre-transposed as (out_features, in_features) for lane-dense matmuls."""
    ks = jax.random.split(key, 7)
    f32 = jnp.float32
    return {
        # context_fn (1x1 conv)
        "wc": 0.2 * jax.random.normal(ks[0], (Cc, C), f32),
        "bc": 0.05 * jax.random.normal(ks[1], (Cc, 1), f32),
        # denoise_fn / student_fn (identical weights, deepcopy semantics)
        "wt": 0.5 * jax.random.normal(ks[2], (hidden, 1), f32),
        "bt": 0.05 * jax.random.normal(ks[3], (hidden, 1), f32),
        "w1x": (1.0 / np.sqrt(C)) * jax.random.normal(ks[4], (hidden, C), f32),
        "w1c": (1.0 / np.sqrt(Cc)) * jax.random.normal(ks[5], (hidden, Cc), f32),
        "b1": jnp.zeros((hidden, 1), f32),
        "w2": (1.0 / np.sqrt(hidden)) * jax.random.normal(ks[6], (C, hidden), f32),
        "b2": jnp.zeros((C, 1), f32),
    }


def gaussian_diffusion_forward(params, images_nchw, key, num_timesteps=1000, k=0):
    B, C, H, W = images_nchw.shape
    # lane-dense activation layout: NCHW with spatial flattened last -> (B, C, H*W)
    x = images_nchw.reshape(B, C, H * W).astype(jnp.float32)

    # ---- training schedule buffers (numpy glue, mirrors __init__) ----
    betas = linear_beta_schedule(num_timesteps)
    alphas = 1.0 - betas
    ac = np.cumprod(alphas, axis=0)
    train_sqrt_ac = jnp.asarray(np.sqrt(ac), jnp.float32)
    train_sqrt_1mac = jnp.asarray(np.sqrt(1.0 - ac), jnp.float32)

    # ---- timestep sampling ----
    tidx2train = np.arange(0, num_timesteps, 2 ** k)
    sidx2train = tidx2train[::2][1:]
    key, k_sample, k_noise = jax.random.split(key, 3)
    sample = jax.random.randint(k_sample, (B,), 0, sidx2train.shape[0])
    sampled_t = jnp.asarray(sidx2train, jnp.int32)[sample]            # (B,)

    noise = jax.random.normal(k_noise, x.shape, dtype=jnp.float32)

    # ---- set_sample_schedule(len(tidx2train)) buffers (numpy glue) ----
    sample_steps = len(tidx2train)
    indice = np.linspace(0, num_timesteps - 1, sample_steps).astype(np.int64)
    alphas_cumprod = ac[indice]
    index = np.arange(num_timesteps)[indice]
    alphas_cumprod_prev = np.concatenate([[1.0], alphas_cumprod[:-1]])
    sqrt_ac_prev = jnp.asarray(np.sqrt(alphas_cumprod_prev), jnp.float32)
    sqrt_1m_ac_prev = jnp.asarray(np.sqrt(1.0 - alphas_cumprod_prev), jnp.float32)
    sqrt_recip_ac = jnp.asarray(np.sqrt(1.0 / alphas_cumprod), jnp.float32)
    sqrt_recipm1_ac = jnp.asarray(np.sqrt(1.0 / alphas_cumprod - 1.0), jnp.float32)
    index_j = jnp.asarray(index, jnp.int32)
    tidx2train_j = jnp.asarray(tidx2train, jnp.int32)

    t_idx = jnp.searchsorted(tidx2train_j, sampled_t).astype(jnp.int32)

    # ---- packed per-batch scalar table (scalar prefetch -> SMEM) ----
    nt = jnp.float32(num_timesteps)
    coef = jnp.stack([
        train_sqrt_ac[sampled_t],                       # q_sample a
        train_sqrt_1mac[sampled_t],                     # q_sample s
        sqrt_recip_ac[t_idx],                           # DDIM cr
        sqrt_recipm1_ac[t_idx],                         # DDIM crm1
        sqrt_ac_prev[t_idx],                            # DDIM cprev
        sqrt_1m_ac_prev[t_idx],                         # DDIM comp (eta=0)
        sampled_t.astype(jnp.float32) / nt,             # t01 student
        index_j[t_idx].astype(jnp.float32) / nt,        # t01 teacher DDIM
        tidx2train_j[t_idx - 1].astype(jnp.float32) / nt,  # t01 teacher target
    ], axis=1).astype(jnp.float32)                       # (B, 9)
    coef = jax.lax.stop_gradient(coef)

    # ---- single fused kernel: context + q_sample + 3x denoise + DDIM + L1 ----
    per_batch = fused_forward(coef, x, noise, params)    # (B,)

    # loss_type='l1', use_loss_weight=False -> weight = 1
    err = jnp.mean(per_batch)
    # TODO(synk): differentiating this loss needs a custom_vjp with stop-grad on the
    # teacher/context path (torch.no_grad in the reference); lpips aux loss
    # (aux_loss_weight>0) and ae_fn encode/decode are not exercised by defaults.
    return err


# ---------------------------------- main ------------------------------------
if __name__ == "__main__":
    B, C, H, W = 2, 4, 16, 16
    Cc, hidden = 8, 32

    root = jax.random.PRNGKey(0)
    k_img, k_param, k_fwd = jax.random.split(root, 3)

    images = jax.random.normal(k_img, (B, C, H, W), dtype=jnp.float32)
    params = init_params(k_param, C, Cc, hidden)

    err = gaussian_diffusion_forward(params, images, k_fwd,
                                     num_timesteps=1000, k=0)
    err = jax.block_until_ready(err)
    assert err.shape == () and bool(jnp.isfinite(err))
    print("KERNEL_OK")
</pallas_src>

<mosaic_0001>
module attributes {stable_mosaic.version = 11 : i64} {
  func.func @_fused_distill_kernel(%arg0: i32, %arg1: memref<2x9xf32, #tpu.memory_space<smem>>, %arg2: memref<1x4x256xf32, #tpu.memory_space<vmem>>, %arg3: memref<1x4x256xf32, #tpu.memory_space<vmem>>, %arg4: memref<8x4xf32, #tpu.memory_space<vmem>>, %arg5: memref<8x1xf32, #tpu.memory_space<vmem>>, %arg6: memref<32x4xf32, #tpu.memory_space<vmem>>, %arg7: memref<32x8xf32, #tpu.memory_space<vmem>>, %arg8: memref<32x1xf32, #tpu.memory_space<vmem>>, %arg9: memref<32x1xf32, #tpu.memory_space<vmem>>, %arg10: memref<32x1xf32, #tpu.memory_space<vmem>>, %arg11: memref<4x32xf32, #tpu.memory_space<vmem>>, %arg12: memref<4x1xf32, #tpu.memory_space<vmem>>, %arg13: memref<1x1x128xf32, #tpu.memory_space<vmem>>) attributes {dimension_semantics = [#tpu.dimension_semantics<parallel>], iteration_bounds = array<i64: 2>, scalar_prefetch = 1 : i64, scratch_operands = 0 : i64, tpu.core_type = #tpu.core_type<tc>, window_params = [{transform_indices = @transform_0, window_bounds = array<i64: 1, 4, 256>}, {transform_indices = @transform_1, window_bounds = array<i64: 1, 4, 256>}, {pipeline_mode = #tpu.pipeline_mode<synchronous>, transform_indices = @transform_2, window_bounds = array<i64: 8, 4>}, {pipeline_mode = #tpu.pipeline_mode<synchronous>, transform_indices = @transform_3, window_bounds = array<i64: 8, 1>}, {pipeline_mode = #tpu.pipeline_mode<synchronous>, transform_indices = @transform_4, window_bounds = array<i64: 32, 4>}, {pipeline_mode = #tpu.pipeline_mode<synchronous>, transform_indices = @transform_5, window_bounds = array<i64: 32, 8>}, {pipeline_mode = #tpu.pipeline_mode<synchronous>, transform_indices = @transform_6, window_bounds = array<i64: 32, 1>}, {pipeline_mode = #tpu.pipeline_mode<synchronous>, transform_indices = @transform_7, window_bounds = array<i64: 32, 1>}, {pipeline_mode = #tpu.pipeline_mode<synchronous>, transform_indices = @transform_8, window_bounds = array<i64: 32, 1>}, {pipeline_mode = #tpu.pipeline_mode<synchronous>, transform_indices = @transform_9, window_bounds = array<i64: 4, 32>}, {pipeline_mode = #tpu.pipeline_mode<synchronous>, transform_indices = @transform_10, window_bounds = array<i64: 4, 1>}, {transform_indices = @transform_11, window_bounds = array<i64: 1, 1, 128>}]} {
    %c0 = arith.constant 0 : index
    %c0_0 = arith.constant 0 : index
    %c0_1 = arith.constant 0 : index
    %0 = vector.load %arg2[%c0, %c0_0, %c0_1] : memref<1x4x256xf32, #tpu.memory_space<vmem>>, vector<1x4x256xf32>
    %1 = vector.shape_cast %0 : vector<1x4x256xf32> to vector<4x256xf32>
    %c0_2 = arith.constant 0 : index
    %c0_3 = arith.constant 0 : index
    %c0_4 = arith.constant 0 : index
    %2 = vector.load %arg3[%c0_2, %c0_3, %c0_4] : memref<1x4x256xf32, #tpu.memory_space<vmem>>, vector<1x4x256xf32>
    %3 = vector.shape_cast %2 : vector<1x4x256xf32> to vector<4x256xf32>
    %4 = arith.index_cast %arg0 : i32 to index
    %c0_5 = arith.constant 0 : index
    %5 = memref.load %arg1[%4, %c0_5] : memref<2x9xf32, #tpu.memory_space<smem>>
    %6 = arith.index_cast %arg0 : i32 to index
    %c1 = arith.constant 1 : index
    %7 = memref.load %arg1[%6, %c1] : memref<2x9xf32, #tpu.memory_space<smem>>
    %8 = arith.index_cast %arg0 : i32 to index
    %c2 = arith.constant 2 : index
    %9 = memref.load %arg1[%8, %c2] : memref<2x9xf32, #tpu.memory_space<smem>>
    %10 = arith.index_cast %arg0 : i32 to index
    %c3 = arith.constant 3 : index
    %11 = memref.load %arg1[%10, %c3] : memref<2x9xf32, #tpu.memory_space<smem>>
    %12 = arith.index_cast %arg0 : i32 to index
    %c4 = arith.constant 4 : index
    %13 = memref.load %arg1[%12, %c4] : memref<2x9xf32, #tpu.memory_space<smem>>
    %14 = arith.index_cast %arg0 : i32 to index
    %c5 = arith.constant 5 : index
    %15 = memref.load %arg1[%14, %c5] : memref<2x9xf32, #tpu.memory_space<smem>>
    %16 = arith.index_cast %arg0 : i32 to index
    %c6 = arith.constant 6 : index
    %17 = memref.load %arg1[%16, %c6] : memref<2x9xf32, #tpu.memory_space<smem>>
    %18 = arith.index_cast %arg0 : i32 to index
    %c7 = arith.constant 7 : index
    %19 = memref.load %arg1[%18, %c7] : memref<2x9xf32, #tpu.memory_space<smem>>
    %20 = arith.index_cast %arg0 : i32 to index
    %c8 = arith.constant 8 : index
    %21 = memref.load %arg1[%20, %c8] : memref<2x9xf32, #tpu.memory_space<smem>>
    %c0_6 = arith.constant 0 : index
    %c0_7 = arith.constant 0 : index
    %22 = vector.load %arg4[%c0_6, %c0_7] : memref<8x4xf32, #tpu.memory_space<vmem>>, vector<8x4xf32>
    %cst = arith.constant dense<0.000000e+00> : vector<8x256xf32>
    %23 = tpu.matmul %22, %1, %cst {dimension_numbers = #tpu.dot_dimension_numbers<[1], [0], [0], [1], [0, 0, 1, 1], [], []>} : vector<8x4xf32>, vector<4x256xf32>, vector<8x256xf32> -> vector<8x256xf32>
    %c0_8 = arith.constant 0 : index
    %c0_9 = arith.constant 0 : index
    %24 = vector.load %arg5[%c0_8, %c0_9] : memref<8x1xf32, #tpu.memory_space<vmem>>, vector<8x1xf32>
    %25 = vector.broadcast %24 : vector<8x1xf32> to vector<8x256xf32>
    %26 = arith.addf %23, %25 : vector<8x256xf32>
    %cst_10 = arith.constant 0.000000e+00 : f32
    %27 = vector.broadcast %cst_10 : f32 to vector<8x256xf32>
    %28 = arith.maximumf %26, %27 : vector<8x256xf32>
    %29 = vector.broadcast %5 : f32 to vector<4x256xf32>
    %30 = arith.mulf %29, %1 : vector<4x256xf32>
    %31 = vector.broadcast %7 : f32 to vector<4x256xf32>
    %32 = arith.mulf %31, %3 : vector<4x256xf32>
    %33 = arith.addf %30, %32 : vector<4x256xf32>
    %c0_11 = arith.constant 0 : index
    %c0_12 = arith.constant 0 : index
    %34 = vector.load %arg7[%c0_11, %c0_12] : memref<32x8xf32, #tpu.memory_space<vmem>>, vector<32x8xf32>
    %cst_13 = arith.constant dense<0.000000e+00> : vector<32x256xf32>
    %35 = tpu.matmul %34, %28, %cst_13 {dimension_numbers = #tpu.dot_dimension_numbers<[1], [0], [0], [1], [0, 0, 1, 1], [], []>} : vector<32x8xf32>, vector<8x256xf32>, vector<32x256xf32> -> vector<32x256xf32>
    %c0_14 = arith.constant 0 : index
    %c0_15 = arith.constant 0 : index
    %36 = vector.load %arg8[%c0_14, %c0_15] : memref<32x1xf32, #tpu.memory_space<vmem>>, vector<32x1xf32>
    %c0_16 = arith.constant 0 : index
    %c0_17 = arith.constant 0 : index
    %37 = vector.load %arg10[%c0_16, %c0_17] : memref<32x1xf32, #tpu.memory_space<vmem>>, vector<32x1xf32>
    %38 = arith.addf %36, %37 : vector<32x1xf32>
    %c0_18 = arith.constant 0 : index
    %c0_19 = arith.constant 0 : index
    %39 = vector.load %arg9[%c0_18, %c0_19] : memref<32x1xf32, #tpu.memory_space<vmem>>, vector<32x1xf32>
    %c0_20 = arith.constant 0 : index
    %c0_21 = arith.constant 0 : index
    %40 = vector.load %arg6[%c0_20, %c0_21] : memref<32x4xf32, #tpu.memory_space<vmem>>, vector<32x4xf32>
    %c0_22 = arith.constant 0 : index
    %c0_23 = arith.constant 0 : index
    %41 = vector.load %arg11[%c0_22, %c0_23] : memref<4x32xf32, #tpu.memory_space<vmem>>, vector<4x32xf32>
    %c0_24 = arith.constant 0 : index
    %c0_25 = arith.constant 0 : index
    %42 = vector.load %arg12[%c0_24, %c0_25] : memref<4x1xf32, #tpu.memory_space<vmem>>, vector<4x1xf32>
    %cst_26 = arith.constant dense<0.000000e+00> : vector<32x256xf32>
    %43 = tpu.matmul %40, %33, %cst_26 {dimension_numbers = #tpu.dot_dimension_numbers<[1], [0], [0], [1], [0, 0, 1, 1], [], []>} : vector<32x4xf32>, vector<4x256xf32>, vector<32x256xf32> -> vector<32x256xf32>
    %44 = arith.addf %43, %35 : vector<32x256xf32>
    %45 = vector.broadcast %38 : vector<32x1xf32> to vector<32x256xf32>
    %46 = arith.addf %44, %45 : vector<32x256xf32>
    %47 = vector.broadcast %17 : f32 to vector<32x1xf32>
    %48 = arith.mulf %47, %39 : vector<32x1xf32>
    %49 = vector.broadcast %48 : vector<32x1xf32> to vector<32x256xf32>
    %50 = arith.addf %46, %49 : vector<32x256xf32>
    %cst_27 = arith.constant 0.000000e+00 : f32
    %51 = vector.broadcast %cst_27 : f32 to vector<32x256xf32>
    %52 = arith.maximumf %50, %51 : vector<32x256xf32>
    %cst_28 = arith.constant dense<0.000000e+00> : vector<4x256xf32>
    %53 = tpu.matmul %41, %52, %cst_28 {dimension_numbers = #tpu.dot_dimension_numbers<[1], [0], [0], [1], [0, 0, 1, 1], [], []>} : vector<4x32xf32>, vector<32x256xf32>, vector<4x256xf32> -> vector<4x256xf32>
    %54 = vector.broadcast %42 : vector<4x1xf32> to vector<4x256xf32>
    %55 = arith.addf %53, %54 : vector<4x256xf32>
    %cst_29 = arith.constant dense<0.000000e+00> : vector<32x256xf32>
    %56 = tpu.matmul %40, %33, %cst_29 {dimension_numbers = #tpu.dot_dimension_numbers<[1], [0], [0], [1], [0, 0, 1, 1], [], []>} : vector<32x4xf32>, vector<4x256xf32>, vector<32x256xf32> -> vector<32x256xf32>
    %57 = arith.addf %56, %35 : vector<32x256xf32>
    %58 = vector.broadcast %38 : vector<32x1xf32> to vector<32x256xf32>
    %59 = arith.addf %57, %58 : vector<32x256xf32>
    %60 = vector.broadcast %19 : f32 to vector<32x1xf32>
    %61 = arith.mulf %60, %39 : vector<32x1xf32>
    %62 = vector.broadcast %61 : vector<32x1xf32> to vector<32x256xf32>
    %63 = arith.addf %59, %62 : vector<32x256xf32>
    %cst_30 = arith.constant 0.000000e+00 : f32
    %64 = vector.broadcast %cst_30 : f32 to vector<32x256xf32>
    %65 = arith.maximumf %63, %64 : vector<32x256xf32>
    %cst_31 = arith.constant dense<0.000000e+00> : vector<4x256xf32>
    %66 = tpu.matmul %41, %65, %cst_31 {dimension_numbers = #tpu.dot_dimension_numbers<[1], [0], [0], [1], [0, 0, 1, 1], [], []>} : vector<4x32xf32>, vector<32x256xf32>, vector<4x256xf32> -> vector<4x256xf32>
    %67 = vector.broadcast %42 : vector<4x1xf32> to vector<4x256xf32>
    %68 = arith.addf %66, %67 : vector<4x256xf32>
    %69 = vector.broadcast %9 : f32 to vector<4x256xf32>
    %70 = arith.mulf %69, %33 : vector<4x256xf32>
    %71 = vector.broadcast %11 : f32 to vector<4x256xf32>
    %72 = arith.mulf %71, %68 : vector<4x256xf32>
    %73 = arith.subf %70, %72 : vector<4x256xf32>
    %cst_32 = arith.constant -1.000000e+00 : f32
    %cst_33 = arith.constant 1.000000e+00 : f32
    %74 = vector.broadcast %cst_32 : f32 to vector<4x256xf32>
    %75 = arith.maximumf %74, %73 : vector<4x256xf32>
    %76 = vector.broadcast %cst_33 : f32 to vector<4x256xf32>
    %77 = arith.minimumf %76, %75 : vector<4x256xf32>
    %78 = vector.broadcast %13 : f32 to vector<4x256xf32>
    %79 = arith.mulf %78, %77 : vector<4x256xf32>
    %80 = vector.broadcast %15 : f32 to vector<4x256xf32>
    %81 = arith.mulf %80, %68 : vector<4x256xf32>
    %82 = arith.addf %79, %81 : vector<4x256xf32>
    %cst_34 = arith.constant dense<0.000000e+00> : vector<32x256xf32>
    %83 = tpu.matmul %40, %82, %cst_34 {dimension_numbers = #tpu.dot_dimension_numbers<[1], [0], [0], [1], [0, 0, 1, 1], [], []>} : vector<32x4xf32>, vector<4x256xf32>, vector<32x256xf32> -> vector<32x256xf32>
    %84 = arith.addf %83, %35 : vector<32x256xf32>
    %85 = vector.broadcast %38 : vector<32x1xf32> to vector<32x256xf32>
    %86 = arith.addf %84, %85 : vector<32x256xf32>
    %87 = vector.broadcast %21 : f32 to vector<32x1xf32>
    %88 = arith.mulf %87, %39 : vector<32x1xf32>
    %89 = vector.broadcast %88 : vector<32x1xf32> to vector<32x256xf32>
    %90 = arith.addf %86, %89 : vector<32x256xf32>
    %cst_35 = arith.constant 0.000000e+00 : f32
    %91 = vector.broadcast %cst_35 : f32 to vector<32x256xf32>
    %92 = arith.maximumf %90, %91 : vector<32x256xf32>
    %cst_36 = arith.constant dense<0.000000e+00> : vector<4x256xf32>
    %93 = tpu.matmul %41, %92, %cst_36 {dimension_numbers = #tpu.dot_dimension_numbers<[1], [0], [0], [1], [0, 0, 1, 1], [], []>} : vector<4x32xf32>, vector<32x256xf32>, vector<4x256xf32> -> vector<4x256xf32>
    %94 = vector.broadcast %42 : vector<4x1xf32> to vector<4x256xf32>
    %95 = arith.addf %93, %94 : vector<4x256xf32>
    %96 = arith.subf %95, %55 : vector<4x256xf32>
    %97 = math.absf %96 : vector<4x256xf32>
    %98 = vector.shape_cast %97 : vector<4x256xf32> to vector<1x4x256xf32>
    %cst_37 = arith.constant dense<0.000000e+00> : vector<1xf32>
    %99 = vector.multi_reduction <add>, %98, %cst_37 [1, 2] : vector<1x4x256xf32> to vector<1xf32>
    %100 = vector.shape_cast %99 : vector<1xf32> to vector<1x1x1xf32>
    %101 = vector.extract %100[0, 0, 0] : f32 from vector<1x1x1xf32>
    %cst_38 = arith.constant 1.024000e+03 : f32
    %102 = arith.divf %101, %cst_38 : f32
    %103 = vector.broadcast %102 : f32 to vector<1x1x128xf32>
    %c0_39 = arith.constant 0 : index
    %c0_40 = arith.constant 0 : index
    %c0_41 = arith.constant 0 : index
    %104 = vector.load %arg13[%c0_39, %c0_40, %c0_41] : memref<1x1x128xf32, #tpu.memory_space<vmem>>, vector<1x1x128xf32>
    tpu.vector_store %arg13[%c0_39, %c0_40, %c0_41], %103 {strides = array<i32>} : memref<1x1x128xf32, #tpu.memory_space<vmem>>, vector<1x1x128xf32>,
    return
  }
  func.func @transform_0(%arg0: i32, %arg1: memref<2x9xf32, #tpu.memory_space<smem>>) -> (i32, i32, i32) {
    %c0_i32 = arith.constant 0 : i32
    %c0_i32_0 = arith.constant 0 : i32
    %c0_i32_1 = arith.constant 0 : i32
    return %arg0, %c0_i32, %c0_i32_0 : i32, i32, i32
  }
  func.func @transform_1(%arg0: i32, %arg1: memref<2x9xf32, #tpu.memory_space<smem>>) -> (i32, i32, i32) {
    %c0_i32 = arith.constant 0 : i32
    %c0_i32_0 = arith.constant 0 : i32
    %c0_i32_1 = arith.constant 0 : i32
    return %arg0, %c0_i32, %c0_i32_0 : i32, i32, i32
  }
  func.func @transform_2(%arg0: i32, %arg1: memref<2x9xf32, #tpu.memory_space<smem>>) -> (i32, i32) {
    %c0_i32 = arith.constant 0 : i32
    %c0_i32_0 = arith.constant 0 : i32
    %c0_i32_1 = arith.constant 0 : i32
    return %c0_i32, %c0_i32_0 : i32, i32
  }
  func.func @transform_3(%arg0: i32, %arg1: memref<2x9xf32, #tpu.memory_space<smem>>) -> (i32, i32) {
    %c0_i32 = arith.constant 0 : i32
    %c0_i32_0 = arith.constant 0 : i32
    %c0_i32_1 = arith.constant 0 : i32
    return %c0_i32, %c0_i32_0 : i32, i32
  }
  func.func @transform_4(%arg0: i32, %arg1: memref<2x9xf32, #tpu.memory_space<smem>>) -> (i32, i32) {
    %c0_i32 = arith.constant 0 : i32
    %c0_i32_0 = arith.constant 0 : i32
    %c0_i32_1 = arith.constant 0 : i32
    return %c0_i32, %c0_i32_0 : i32, i32
  }
  func.func @transform_5(%arg0: i32, %arg1: memref<2x9xf32, #tpu.memory_space<smem>>) -> (i32, i32) {
    %c0_i32 = arith.constant 0 : i32
    %c0_i32_0 = arith.constant 0 : i32
    %c0_i32_1 = arith.constant 0 : i32
    return %c0_i32, %c0_i32_0 : i32, i32
  }
  func.func @transform_6(%arg0: i32, %arg1: memref<2x9xf32, #tpu.memory_space<smem>>) -> (i32, i32) {
    %c0_i32 = arith.constant 0 : i32
    %c0_i32_0 = arith.constant 0 : i32
    %c0_i32_1 = arith.constant 0 : i32
    return %c0_i32, %c0_i32_0 : i32, i32
  }
  func.func @transform_7(%arg0: i32, %arg1: memref<2x9xf32, #tpu.memory_space<smem>>) -> (i32, i32) {
    %c0_i32 = arith.constant 0 : i32
    %c0_i32_0 = arith.constant 0 : i32
    %c0_i32_1 = arith.constant 0 : i32
    return %c0_i32, %c0_i32_0 : i32, i32
  }
  func.func @transform_8(%arg0: i32, %arg1: memref<2x9xf32, #tpu.memory_space<smem>>) -> (i32, i32) {
    %c0_i32 = arith.constant 0 : i32
    %c0_i32_0 = arith.constant 0 : i32
    %c0_i32_1 = arith.constant 0 : i32
    return %c0_i32, %c0_i32_0 : i32, i32
  }
  func.func @transform_9(%arg0: i32, %arg1: memref<2x9xf32, #tpu.memory_space<smem>>) -> (i32, i32) {
    %c0_i32 = arith.constant 0 : i32
    %c0_i32_0 = arith.constant 0 : i32
    %c0_i32_1 = arith.constant 0 : i32
    return %c0_i32, %c0_i32_0 : i32, i32
  }
  func.func @transform_10(%arg0: i32, %arg1: memref<2x9xf32, #tpu.memory_space<smem>>) -> (i32, i32) {
    %c0_i32 = arith.constant 0 : i32
    %c0_i32_0 = arith.constant 0 : i32
    %c0_i32_1 = arith.constant 0 : i32
    return %c0_i32, %c0_i32_0 : i32, i32
  }
  func.func @transform_11(%arg0: i32, %arg1: memref<2x9xf32, #tpu.memory_space<smem>>) -> (i32, i32, i32) {
    %c0_i32 = arith.constant 0 : i32
    %c0_i32_0 = arith.constant 0 : i32
    %c0_i32_1 = arith.constant 0 : i32
    return %arg0, %c0_i32, %c0_i32_0 : i32, i32, i32
  }
}

</mosaic_0001>

<llo_original>
// kernel: tpu_custom_call.1
$region0: #{tpu_custom_call.1}
  #allocation0 [shape = 'u32[]', space=smem, size = 0x4, offset = 0x4, fixed_abs, tag = 'smem constant byte address 0x4 - core index']
  #allocation1 [shape = 'u32[144,128]{1,0:T(1,128)}', space=vmem, size = 0x12000, scoped, tag = 'internal scratch']
  #allocation2 [shape = 's32[1]{0}', space=sflag, size = 0x4, scoped, tag = 'scoped memory for tpu_custom_call.1']
  #allocation3 [shape = 'u8[1024]{0}', space=smem, size = 0x400, scoped, tag = 'prefetched SMEM operand 0']
  %s0 = inlined_call_operand.vmem [shape: f32[2,9], index: 0, kind: input, shape index: {}]
  %s1 = inlined_call_operand.vmem [shape: f32[2,4,256], index: 1, kind: input, shape index: {}]
  %s2 = inlined_call_operand.vmem [shape: f32[2,4,256], index: 2, kind: input, shape index: {}]
  %s3 = inlined_call_operand.vmem [shape: f32[8,4], index: 3, kind: input, shape index: {}]
  %s4 = inlined_call_operand.vmem [shape: f32[8,1], index: 4, kind: input, shape index: {}]
  %s5 = inlined_call_operand.vmem [shape: f32[32,4], index: 5, kind: input, shape index: {}]
  %s6 = inlined_call_operand.vmem [shape: f32[32,8], index: 6, kind: input, shape index: {}]
  %s7 = inlined_call_operand.vmem [shape: f32[32,1], index: 7, kind: input, shape index: {}]
  %s8 = inlined_call_operand.vmem [shape: f32[32,1], index: 8, kind: input, shape index: {}]
  %s9 = inlined_call_operand.vmem [shape: f32[32,1], index: 9, kind: input, shape index: {}]
  %s10 = inlined_call_operand.vmem [shape: f32[4,32], index: 10, kind: input, shape index: {}]
  %s11 = inlined_call_operand.vmem [shape: f32[4,1], index: 11, kind: input, shape index: {}]
  %s12 = inlined_call_operand.hbm [shape: f32[2,1,128], index: 12, kind: output, shape index: {}]
  %s13 = sld [smem:[#allocation0]]
  $region77: #{tpu_custom_call.1} parent=0
    _
  %s15 = ssub.s32 1, %s13
  %s16 = scalar_select 0, %s15, %s13
  %s17 = sshll.u32 %s0, 4
  %s18 = int_to_ptr.vmem [resolvable:$true] %s17
  %20 = dma.vmem_to_smem %s18, 32, [#allocation3], [#allocation2]
  %21 = dma.done [#allocation2], 32
  %22 = sfence
  $region1: #{tpu_custom_call.1} parent=0
    #allocation4 [shape = 'u8[1024]{0}', space=vmem, size = 0x400, scoped, tag = 'output window, operand 0']
    #allocation5 [shape = 's32[2]{0}', space=sflag, size = 0x8, scoped, tag = 'scoped memory for tpu_custom_call.1']
    %23 = vsyncpa [#allocation5], 0
    %s24 = scalar_lea.sflag [#allocation5], 1
    %25 = vsyncpa %s24, 0
    loop: start=0, step=1, limit=4
    $region2: #{tpu_custom_call.1} parent=1 // loop_pre_header
      _
    $region3: #{tpu_custom_call.1} parent=1 // loop_header
      %s27 = sphi 0, %s31
      %p28 = scmp.ge.s32.totalorder %s27, 4
      %s37 = sphi 0, %s39
      %s40 = sphi 0, %s37
      %s41 = sphi 0, %s40
      %s57 = sphi 0, %s41
      %s63 = sphi 0, %s65
      %s66 = sphi 0, %s63
      %s67 = sphi 0, %s66
      %s83 = sphi 0, %s67
      %s87 = sphi 0, %s87
      %s89 = sphi 0, %s87
      %s90 = sphi 0, %s89
      %s104 = sphi 0, %s90
      %s108 = sphi 0, %s108
      %s110 = sphi 0, %s108
      %s111 = sphi 0, %s110
      %s125 = sphi 0, %s111
      %s129 = sphi 0, %s129
      %s131 = sphi 0, %s129
      %s132 = sphi 0, %s131
      %s146 = sphi 0, %s132
      %s150 = sphi 0, %s150
      %s152 = sphi 0, %s150
      %s153 = sphi 0, %s152
      %s167 = sphi 0, %s153
      %s171 = sphi 0, %s171
      %s173 = sphi 0, %s171
      %s174 = sphi 0, %s173
      %s188 = sphi 0, %s174
      %s192 = sphi 0, %s192
      %s194 = sphi 0, %s192
      %s195 = sphi 0, %s194
      %s209 = sphi 0, %s195
      %s213 = sphi 0, %s213
      %s215 = sphi 0, %s213
      %s216 = sphi 0, %s215
      %s230 = sphi 0, %s216
      %s234 = sphi 0, %s234
      %s236 = sphi 0, %s234
      %s237 = sphi 0, %s236
      %s251 = sphi 0, %s237
      %s255 = sphi 0, %s255
      %s257 = sphi 0, %s255
      %s258 = sphi 0, %s257
      %s272 = sphi 0, %s258
      %s278 = sphi 0, %s280
      %s281 = sphi 0, %s278
      %s282 = sphi 0, %s281
      %s298 = sphi 0, %s282
    $region4: #{tpu_custom_call.1} parent=1 // loop_header_branch
      %30 = sbr.rel (%p28) target = $region8
    $region5: #{tpu_custom_call.1} parent=1 // loop_body
      %s32 = ssub.s32 %s27, 1
      %s33 = ssub.s32 %s27, 2
      %s34 = sadd.s32 %s27, 1
      %s35 = ssub.s32 %s27, %s34
      %p36 = scmp.eq.s32.totalorder %s35, 0
      %s38 = sadd.s32 %s37, 1
      %s39 = scalar_select %p36, %s37, %s38
      %p42 = pneg %p36
      %p43 = scmp.eq.s32.totalorder %s27, 1
      %p44 = por %p42, %p43
      %p45 = scmp.ne.s32.totalorder %s37, %s40
      %p46 = scmp.eq.s32.totalorder %s27, 0
      %p47 = por %p45, %p46
      %p48 = scmp.ne.s32.totalorder %s37, %s40
      %p49 = scmp.eq.s32.totalorder %s32, 1
      %p50 = por %p48, %p49
      %p51 = scmp.ne.s32.totalorder %s40, %s41
      %p52 = scmp.eq.s32.totalorder %s32, 0
      %p53 = por %p51, %p52
      %p54 = scmp.ne.s32.totalorder %s40, %s41
      %p55 = scmp.eq.s32.totalorder %s33, 1
      %p56 = por %p54, %p55
      %p58 = scmp.ne.s32.totalorder %s41, %s57
      %p59 = scmp.eq.s32.totalorder %s33, 0
      %p60 = por %p58, %p59
      %s61 = ssub.s32 %s27, %s34
      %p62 = scmp.eq.s32.totalorder %s61, 0
      %s64 = sadd.s32 %s63, 1
      %s65 = scalar_select %p62, %s63, %s64
      %p68 = pneg %p62
      %p69 = scmp.eq.s32.totalorder %s27, 1
      %p70 = por %p68, %p69
      %p71 = scmp.ne.s32.totalorder %s63, %s66
      %p72 = scmp.eq.s32.totalorder %s27, 0
      %p73 = por %p71, %p72
      %p74 = scmp.ne.s32.totalorder %s63, %s66
      %p75 = scmp.eq.s32.totalorder %s32, 1
      %p76 = por %p74, %p75
      %p77 = scmp.ne.s32.totalorder %s66, %s67
      %p78 = scmp.eq.s32.totalorder %s32, 0
      %p79 = por %p77, %p78
      %p80 = scmp.ne.s32.totalorder %s66, %s67
      %p81 = scmp.eq.s32.totalorder %s33, 1
      %p82 = por %p80, %p81
      %p84 = scmp.ne.s32.totalorder %s67, %s83
      %p85 = scmp.eq.s32.totalorder %s33, 0
      %p86 = por %p84, %p85
      %s88 = sadd.s32 %s87, 1
      %p91 = scmp.eq.s32.totalorder %s27, 1
      %p92 = scmp.ne.s32.totalorder %s87, %s89
      %p93 = scmp.eq.s32.totalorder %s27, 0
      %p94 = por %p92, %p93
      %p95 = scmp.ne.s32.totalorder %s87, %s89
      %p96 = scmp.eq.s32.totalorder %s32, 1
      %p97 = por %p95, %p96
      %p98 = scmp.ne.s32.totalorder %s89, %s90
      %p99 = scmp.eq.s32.totalorder %s32, 0
      %p100 = por %p98, %p99
      %p101 = scmp.ne.s32.totalorder %s89, %s90
      %p102 = scmp.eq.s32.totalorder %s33, 1
      %p103 = por %p101, %p102
      %p105 = scmp.ne.s32.totalorder %s90, %s104
      %p106 = scmp.eq.s32.totalorder %s33, 0
      %p107 = por %p105, %p106
      %s109 = sadd.s32 %s108, 1
      %p112 = scmp.eq.s32.totalorder %s27, 1
      %p113 = scmp.ne.s32.totalorder %s108, %s110
      %p114 = scmp.eq.s32.totalorder %s27, 0
      %p115 = por %p113, %p114
      %p116 = scmp.ne.s32.totalorder %s108, %s110
      %p117 = scmp.eq.s32.totalorder %s32, 1
      %p118 = por %p116, %p117
      %p119 = scmp.ne.s32.totalorder %s110, %s111
      %p120 = scmp.eq.s32.totalorder %s32, 0
      %p121 = por %p119, %p120
      %p122 = scmp.ne.s32.totalorder %s110, %s111
      %p123 = scmp.eq.s32.totalorder %s33, 1
      %p124 = por %p122, %p123
      %p126 = scmp.ne.s32.totalorder %s111, %s125
      %p127 = scmp.eq.s32.totalorder %s33, 0
      %p128 = por %p126, %p127
      %s130 = sadd.s32 %s129, 1
      %p133 = scmp.eq.s32.totalorder %s27, 1
      %p134 = scmp.ne.s32.totalorder %s129, %s131
      %p135 = scmp.eq.s32.totalorder %s27, 0
      %p136 = por %p134, %p135
      %p137 = scmp.ne.s32.totalorder %s129, %s131
      %p138 = scmp.eq.s32.totalorder %s32, 1
      %p139 = por %p137, %p138
      %p140 = scmp.ne.s32.totalorder %s131, %s132
      %p141 = scmp.eq.s32.totalorder %s32, 0
      %p142 = por %p140, %p141
      %p143 = scmp.ne.s32.totalorder %s131, %s132
      %p144 = scmp.eq.s32.totalorder %s33, 1
      %p145 = por %p143, %p144
      %p147 = scmp.ne.s32.totalorder %s132, %s146
      %p148 = scmp.eq.s32.totalorder %s33, 0
      %p149 = por %p147, %p148
      %s151 = sadd.s32 %s150, 1
      %p154 = scmp.eq.s32.totalorder %s27, 1
      %p155 = scmp.ne.s32.totalorder %s150, %s152
      %p156 = scmp.eq.s32.totalorder %s27, 0
      %p157 = por %p155, %p156
      %p158 = scmp.ne.s32.totalorder %s150, %s152
      %p159 = scmp.eq.s32.totalorder %s32, 1
      %p160 = por %p158, %p159
      %p161 = scmp.ne.s32.totalorder %s152, %s153
      %p162 = scmp.eq.s32.totalorder %s32, 0
      %p163 = por %p161, %p162
      %p164 = scmp.ne.s32.totalorder %s152, %s153
      %p165 = scmp.eq.s32.totalorder %s33, 1
      %p166 = por %p164, %p165
      %p168 = scmp.ne.s32.totalorder %s153, %s167
      %p169 = scmp.eq.s32.totalorder %s33, 0
      %p170 = por %p168, %p169
      %s172 = sadd.s32 %s171, 1
      %p175 = scmp.eq.s32.totalorder %s27, 1
      %p176 = scmp.ne.s32.totalorder %s171, %s173
      %p177 = scmp.eq.s32.totalorder %s27, 0
      %p178 = por %p176, %p177
      %p179 = scmp.ne.s32.totalorder %s171, %s173
      %p180 = scmp.eq.s32.totalorder %s32, 1
      %p181 = por %p179, %p180
      %p182 = scmp.ne.s32.totalorder %s173, %s174
      %p183 = scmp.eq.s32.totalorder %s32, 0
      %p184 = por %p182, %p183
      %p185 = scmp.ne.s32.totalorder %s173, %s174
      %p186 = scmp.eq.s32.totalorder %s33, 1
      %p187 = por %p185, %p186
      %p189 = scmp.ne.s32.totalorder %s174, %s188
      %p190 = scmp.eq.s32.totalorder %s33, 0
      %p191 = por %p189, %p190
      %s193 = sadd.s32 %s192, 1
      %p196 = scmp.eq.s32.totalorder %s27, 1
      %p197 = scmp.ne.s32.totalorder %s192, %s194
      %p198 = scmp.eq.s32.totalorder %s27, 0
      %p199 = por %p197, %p198
      %p200 = scmp.ne.s32.totalorder %s192, %s194
      %p201 = scmp.eq.s32.totalorder %s32, 1
      %p202 = por %p200, %p201
      %p203 = scmp.ne.s32.totalorder %s194, %s195
      %p204 = scmp.eq.s32.totalorder %s32, 0
      %p205 = por %p203, %p204
      %p206 = scmp.ne.s32.totalorder %s194, %s195
      %p207 = scmp.eq.s32.totalorder %s33, 1
      %p208 = por %p206, %p207
      %p210 = scmp.ne.s32.totalorder %s195, %s209
      %p211 = scmp.eq.s32.totalorder %s33, 0
      %p212 = por %p210, %p211
      %s214 = sadd.s32 %s213, 1
      %p217 = scmp.eq.s32.totalorder %s27, 1
      %p218 = scmp.ne.s32.totalorder %s213, %s215
      %p219 = scmp.eq.s32.totalorder %s27, 0
      %p220 = por %p218, %p219
      %p221 = scmp.ne.s32.totalorder %s213, %s215
      %p222 = scmp.eq.s32.totalorder %s32, 1
      %p223 = por %p221, %p222
      %p224 = scmp.ne.s32.totalorder %s215, %s216
      %p225 = scmp.eq.s32.totalorder %s32, 0
      %p226 = por %p224, %p225
      %p227 = scmp.ne.s32.totalorder %s215, %s216
      %p228 = scmp.eq.s32.totalorder %s33, 1
      %p229 = por %p227, %p228
      %p231 = scmp.ne.s32.totalorder %s216, %s230
      %p232 = scmp.eq.s32.totalorder %s33, 0
      %p233 = por %p231, %p232
      %s235 = sadd.s32 %s234, 1
      %p238 = scmp.eq.s32.totalorder %s27, 1
      %p239 = scmp.ne.s32.totalorder %s234, %s236
      %p240 = scmp.eq.s32.totalorder %s27, 0
      %p241 = por %p239, %p240
      %p242 = scmp.ne.s32.totalorder %s234, %s236
      %p243 = scmp.eq.s32.totalorder %s32, 1
      %p244 = por %p242, %p243
      %p245 = scmp.ne.s32.totalorder %s236, %s237
      %p246 = scmp.eq.s32.totalorder %s32, 0
      %p247 = por %p245, %p246
      %p248 = scmp.ne.s32.totalorder %s236, %s237
      %p249 = scmp.eq.s32.totalorder %s33, 1
      %p250 = por %p248, %p249
      %p252 = scmp.ne.s32.totalorder %s237, %s251
      %p253 = scmp.eq.s32.totalorder %s33, 0
      %p254 = por %p252, %p253
      %s256 = sadd.s32 %s255, 1
      %p259 = scmp.eq.s32.totalorder %s27, 1
      %p260 = scmp.ne.s32.totalorder %s255, %s257
      %p261 = scmp.eq.s32.totalorder %s27, 0
      %p262 = por %p260, %p261
      %p263 = scmp.ne.s32.totalorder %s255, %s257
      %p264 = scmp.eq.s32.totalorder %s32, 1
      %p265 = por %p263, %p264
      %p266 = scmp.ne.s32.totalorder %s257, %s258
      %p267 = scmp.eq.s32.totalorder %s32, 0
      %p268 = por %p266, %p267
      %p269 = scmp.ne.s32.totalorder %s257, %s258
      %p270 = scmp.eq.s32.totalorder %s33, 1
      %p271 = por %p269, %p270
      %p273 = scmp.ne.s32.totalorder %s258, %s272
      %p274 = scmp.eq.s32.totalorder %s33, 0
      %p275 = por %p273, %p274
      %s276 = ssub.s32 %s27, %s34
      %p277 = scmp.eq.s32.totalorder %s276, 0
      %s279 = sadd.s32 %s278, 1
      %s280 = scalar_select %p277, %s278, %s279
      %p283 = pneg %p277
      %p284 = scmp.eq.s32.totalorder %s27, 1
      %p285 = por %p283, %p284
      %p286 = scmp.ne.s32.totalorder %s278, %s281
      %p287 = scmp.eq.s32.totalorder %s27, 0
      %p288 = por %p286, %p287
      %p289 = scmp.ne.s32.totalorder %s278, %s281
      %p290 = scmp.eq.s32.totalorder %s32, 1
      %p291 = por %p289, %p290
      %p292 = scmp.ne.s32.totalorder %s281, %s282
      %p293 = scmp.eq.s32.totalorder %s32, 0
      %p294 = por %p292, %p293
      %p295 = scmp.ne.s32.totalorder %s281, %s282
      %p296 = scmp.eq.s32.totalorder %s33, 1
      %p297 = por %p295, %p296
      %p299 = scmp.ne.s32.totalorder %s282, %s298
      %p300 = scmp.eq.s32.totalorder %s33, 0
      %p301 = por %p299, %p300
      %p302 = scmp.le.s32.totalorder 1, %s27
      %p303 = scmp.lt.s32.totalorder %s27, 3
      %p304 = pnand %p302, %p303
      %p305 = pneg %p304
      // Predicated region
      $region9: #{tpu_custom_call.1} parent=5 // pred_check
        _
      $region10: #{tpu_custom_call.1} parent=5 // pred_check_branch
        %307 = sbr.rel (%p304) target = $region12
      $region11: #{tpu_custom_call.1} parent=5 // pred_region
        %s308 = ssub.s32 %s27, 1
        // Predicated region
        $region13: #{tpu_custom_call.1} parent=11 // pred_check
          %p309 = pneg %p100
        $region14: #{tpu_custom_call.1} parent=11 // pred_check_branch
          %311 = sbr.rel (%p309) target = $region16
        $region15: #{tpu_custom_call.1} parent=11 // pred_region
          _
        $region16: #{tpu_custom_call.1} parent=11 // pred_fallthru
          _
        // Predicated region
        $region17: #{tpu_custom_call.1} parent=11 // pred_check
          %p312 = pneg %p121
        $region18: #{tpu_custom_call.1} parent=11 // pred_check_branch
          %314 = sbr.rel (%p312) target = $region20
        $region19: #{tpu_custom_call.1} parent=11 // pred_region
          _
        $region20: #{tpu_custom_call.1} parent=11 // pred_fallthru
          _
        // Predicated region
        $region21: #{tpu_custom_call.1} parent=11 // pred_check
          %p315 = pneg %p142
        $region22: #{tpu_custom_call.1} parent=11 // pred_check_branch
          %317 = sbr.rel (%p315) target = $region24
        $region23: #{tpu_custom_call.1} parent=11 // pred_region
          _
        $region24: #{tpu_custom_call.1} parent=11 // pred_fallthru
          _
        // Predicated region
        $region25: #{tpu_custom_call.1} parent=11 // pred_check
          %p318 = pneg %p163
        $region26: #{tpu_custom_call.1} parent=11 // pred_check_branch
          %320 = sbr.rel (%p318) target = $region28
        $region27: #{tpu_custom_call.1} parent=11 // pred_region
          _
        $region28: #{tpu_custom_call.1} parent=11 // pred_fallthru
          _
        // Predicated region
        $region29: #{tpu_custom_call.1} parent=11 // pred_check
          %p321 = pneg %p184
        $region30: #{tpu_custom_call.1} parent=11 // pred_check_branch
          %323 = sbr.rel (%p321) target = $region32
        $region31: #{tpu_custom_call.1} parent=11 // pred_region
          _
        $region32: #{tpu_custom_call.1} parent=11 // pred_fallthru
          _
        // Predicated region
        $region33: #{tpu_custom_call.1} parent=11 // pred_check
          %p324 = pneg %p205
        $region34: #{tpu_custom_call.1} parent=11 // pred_check_branch
          %326 = sbr.rel (%p324) target = $region36
        $region35: #{tpu_custom_call.1} parent=11 // pred_region
          _
        $region36: #{tpu_custom_call.1} parent=11 // pred_fallthru
          _
        // Predicated region
        $region37: #{tpu_custom_call.1} parent=11 // pred_check
          %p327 = pneg %p226
        $region38: #{tpu_custom_call.1} parent=11 // pred_check_branch
          %329 = sbr.rel (%p327) target = $region40
        $region39: #{tpu_custom_call.1} parent=11 // pred_region
          _
        $region40: #{tpu_custom_call.1} parent=11 // pred_fallthru
          _
        // Predicated region
        $region41: #{tpu_custom_call.1} parent=11 // pred_check
          %p330 = pneg %p247
        $region42: #{tpu_custom_call.1} parent=11 // pred_check_branch
          %332 = sbr.rel (%p330) target = $region44
        $region43: #{tpu_custom_call.1} parent=11 // pred_region
          _
        $region44: #{tpu_custom_call.1} parent=11 // pred_fallthru
          _
        // Predicated region
        $region45: #{tpu_custom_call.1} parent=11 // pred_check
          %p333 = pneg %p268
        $region46: #{tpu_custom_call.1} parent=11 // pred_check_branch
          %335 = sbr.rel (%p333) target = $region48
        $region47: #{tpu_custom_call.1} parent=11 // pred_region
          _
        $region48: #{tpu_custom_call.1} parent=11 // pred_fallthru
          _
      $region12: #{tpu_custom_call.1} parent=5 // pred_fallthru
        _
      %p336 = scmp.lt.s32.totalorder %s27, 2
      // Predicated region
      $region49: #{tpu_custom_call.1} parent=5 // pred_check
        %p337 = pneg %p336
      $region50: #{tpu_custom_call.1} parent=5 // pred_check_branch
        %339 = sbr.rel (%p337) target = $region52
      $region51: #{tpu_custom_call.1} parent=5 // pred_region
        // Predicated region
        $region53: #{tpu_custom_call.1} parent=51 // pred_check
          %p340 = pneg %p47
        $region54: #{tpu_custom_call.1} parent=51 // pred_check_branch
          %342 = sbr.rel (%p340) target = $region56
        $region55: #{tpu_custom_call.1} parent=51 // pred_region
          %p343 = scmp.lt.s32.totalorder %s27, 1
          %s344 = scalar_select %p343, %s27, 1
          %s345 = smul.addr %s344, 2
          %s346 = smul.addr %s345, 4
          %s347 = scalar_lea.vmem %s1, %s346
        $region56: #{tpu_custom_call.1} parent=51 // pred_fallthru
          _
        // Predicated region
        $region57: #{tpu_custom_call.1} parent=51 // pred_check
          %p348 = pneg %p73
        $region58: #{tpu_custom_call.1} parent=51 // pred_check_branch
          %350 = sbr.rel (%p348) target = $region60
        $region59: #{tpu_custom_call.1} parent=51 // pred_region
          %p351 = scmp.lt.s32.totalorder %s27, 1
          %s352 = scalar_select %p351, %s27, 1
          %s353 = smul.addr %s352, 2
          %s354 = smul.addr %s353, 4
          %s355 = scalar_lea.vmem %s2, %s354
        $region60: #{tpu_custom_call.1} parent=51 // pred_fallthru
          _
      $region52: #{tpu_custom_call.1} parent=5 // pred_fallthru
        _
      %p356 = scmp.le.s32.totalorder 1, %s27
      %p357 = scmp.lt.s32.totalorder %s27, 3
      %p358 = pnand %p356, %p357
      %p359 = pneg %p358
      // Predicated region
      $region61: #{tpu_custom_call.1} parent=5 // pred_check
        _
      $region62: #{tpu_custom_call.1} parent=5 // pred_check_branch
        %361 = sbr.rel (%p358) target = $region64
      $region63: #{tpu_custom_call.1} parent=5 // pred_region
        %s362 = ssub.s32 %s27, 1
        %p363 = scmp.lt.s32.totalorder %s32, 1
        %s364 = scalar_select %p363, %s32, 1
        %s365 = smul.addr %s364, 2
        %s366 = smul.addr %s365, 4
        %s367 = scalar_lea.vmem %s1, %s366
        %p368 = pneg %p53
        %p369 = pneg %p50
        %p370 = scmp.lt.s32.totalorder %s32, 1
        %s371 = scalar_select %p370, %s32, 1
        %s372 = smul.addr %s371, 2
        %s373 = smul.addr %s372, 4
        %s374 = scalar_lea.vmem %s2, %s373
        %p375 = pneg %p79
        %p376 = pneg %p76
        %p377 = pneg %p100
        %p378 = pneg %p97
        %p379 = pneg %p121
        %p380 = pneg %p118
        %p381 = pneg %p142
        %p382 = pneg %p139
        %p383 = pneg %p163
        %p384 = pneg %p160
        %p385 = pneg %p184
        %p386 = pneg %p181
        %p387 = pneg %p205
        %p388 = pneg %p202
        %p389 = pneg %p226
        %p390 = pneg %p223
        %p391 = pneg %p247
        %p392 = pneg %p244
        %p393 = pneg %p268
        %p394 = pneg %p265
        %p395 = pneg %p294
        %p396 = pneg %p291
        %s397 = sand.u32 %s281, 1
        %s398 = scalar_lea.sflag [#allocation5], %s397
        %s399 = sand.u32 %s281, 1
        %s400 = scalar_lea.vmem [#allocation4], %s399
        %p401 = scmp.lt.s32.totalorder %s32, 1
        %s402 = scalar_select %p401, %s32, 1
        %s403 = smul.addr %s402, 2
        %s404 = smul.addr %s403, 4
        %s405 = scalar_lea.vmem %s1, %s404
        %p406 = scmp.lt.s32.totalorder %s32, 1
        %s407 = scalar_select %p406, %s32, 1
        %s408 = smul.addr %s407, 2
        %s409 = smul.addr %s408, 4
        %s410 = scalar_lea.vmem %s2, %s409
        %v411 = vld [vmem:[%s405] sm:$0xff]
        %v412 = vld [vmem:[%s410] sm:$0xff]
        %s413 = smul.u32 %s32, 128
        %s414 = sld [smem:[#allocation3 + %s413]]
        %s415 = sadd.s32 %s413, 1
        %s416 = sld [smem:[#allocation3 + %s415]]
        %s417 = sadd.s32 %s413, 2
        %s418 = sld [smem:[#allocation3 + %s417]]
        %s419 = sadd.s32 %s413, 3
        %s420 = sld [smem:[#allocation3 + %s419]]
        %s421 = sadd.s32 %s413, 4
        %s422 = sld [smem:[#allocation3 + %s421]]
        %s423 = sadd.s32 %s413, 5
        %s424 = sld [smem:[#allocation3 + %s423]]
        %s425 = sadd.s32 %s413, 6
        %s426 = sld [smem:[#allocation3 + %s425]]
        %s427 = sadd.s32 %s413, 7
        %s428 = sld [smem:[#allocation3 + %s427]]
        %s429 = sadd.s32 %s413, 8
        %s430 = sld [smem:[#allocation3 + %s429]]
        %v431 = vld [vmem:[%s3] sm:$0xff]
        %v432 = vld [vmem:[%s4] sm:$0xff]
        %434 = vset.pattern.permute.xlu0 0
        %435 = vperm.xlu0 %434, %v432
        %v436 = vpop.permute.xlu0 %435
        %v439 = vcombine.high %v411, %v411
        %vm440 = vcmask 31744
        %v442 = vsel %vm440, %v431, 0
        %vm444 = vcmask 1043456
        %v445 = vsel %vm444, %v411, 0
        %v447 = vsel %vm444, %v439, 0
        %449 = vmatprep.subr.mxu0 %v447
        %450 = vmatpush1.msra.mxu0 %v445
        %451 = vmatprep.subr.mxu0 0.0
        %452 = vmatpush1.msra.mxu0 0.0
        %453 = vmatprep.subr.mxu0 0.0
        %454 = vmatpush1.msra.mxu0 0.0
        %455 = vmatprep.subr.mxu0 0.0
        %456 = vmatpush1.msra.mxu0 0.0
        %457 = vmatprep.subr.mxu0 0.0
        %458 = vmatpush1.msra.mxu0 0.0
        %459 = vmatprep.subr.mxu0 0.0
        %460 = vmatpush1.msra.mxu0 0.0
        %461 = vmatprep.subr.mxu0 0.0
        %462 = vmatpush1.msra.mxu0 0.0
        %463 = vmatprep.subr.mxu0 0.0
        %464 = vmatpush1.msra.mxu0 0.0
        %465 = vmatprep.subr.mxu0 0.0
        %466 = vmatpush1.msra.mxu0 0.0
        %467 = vmatprep.subr.mxu0 0.0
        %468 = vmatpush1.msra.mxu0 0.0
        %469 = vmatprep.subr.mxu0 0.0
        %470 = vmatpush1.msra.mxu0 0.0
        %471 = vmatprep.subr.mxu0 0.0
        %472 = vmatpush1.msra.mxu0 0.0
        %473 = vmatprep.subr.mxu0 0.0
        %474 = vmatpush1.msra.mxu0 0.0
        %475 = vmatprep.subr.mxu0 0.0
        %476 = vmatpush1.msra.mxu0 0.0
        %477 = vmatprep.subr.mxu0 0.0
        %478 = vmatpush1.msra.mxu0 0.0
        %479 = vmatprep.subr.mxu0 0.0
        %480 = vmatpush1.msra.mxu0 0.0
        %481 = vmatprep.subr.mxu0 0.0
        %482 = vmatpush1.msra.mxu0 0.0
        %483 = vmatprep.subr.mxu0 0.0
        %484 = vmatpush1.msra.mxu0 0.0
        %485 = vmatprep.subr.mxu0 0.0
        %486 = vmatpush1.msra.mxu0 0.0
        %487 = vmatprep.subr.mxu0 0.0
        %488 = vmatpush1.msra.mxu0 0.0
        %489 = vmatprep.subr.mxu0 0.0
        %490 = vmatpush1.msra.mxu0 0.0
        %491 = vmatprep.subr.mxu0 0.0
        %492 = vmatpush1.msra.mxu0 0.0
        %493 = vmatprep.subr.mxu0 0.0
        %494 = vmatpush1.msra.mxu0 0.0
        %495 = vmatprep.subr.mxu0 0.0
        %496 = vmatpush1.msra.mxu0 0.0
        %497 = vmatprep.subr.mxu0 0.0
        %498 = vmatpush1.msra.mxu0 0.0
        %499 = vmatprep.subr.mxu0 0.0
        %500 = vmatpush1.msra.mxu0 0.0
        %501 = vmatprep.subr.mxu0 0.0
        %502 = vmatpush1.msra.mxu0 0.0
        %503 = vmatprep.subr.mxu0 0.0
        %504 = vmatpush1.msra.mxu0 0.0
        %505 = vmatprep.subr.mxu0 0.0
        %506 = vmatpush1.msra.mxu0 0.0
        %507 = vmatprep.subr.mxu0 0.0
        %508 = vmatpush1.msra.mxu0 0.0
        %509 = vmatprep.subr.mxu0 0.0
        %510 = vmatpush1.msra.mxu0 0.0
        %511 = vmatprep.subr.mxu0 0.0
        %512 = vmatpush1.msra.mxu0 0.0
        %513 = vmatprep.mubr.f32.mxu0 0.0
        %514 = vmatmul.mubr.f32.gmra.mrb[0].mxu0 %v442
        %v515 = vpop.f32.mrb[0].mxu0
        %v516 = vadd.f32 %v436, %v515
        %v517 = vpop.f32.mrb[0].mxu0
        %v518 = vadd.f32 %v436, %v517
        %519 = vdwg.mxu0
        %v520 = vmax.f32 %v516, 0.0
        %v521 = vmax.f32 %v518, 0.0
        %v522 = vstv %s414
        %v523 = vmul.f32 %v522, %v411
        %v524 = vstv %s416
        %v525 = vmul.f32 %v524, %v412
        %v526 = vadd.f32 %v523, %v525
        %v527 = vld [vmem:[%s6] sm:$0xff]
        %v528 = vld [vmem:[%s6 + $0x8] sm:$0xff]
        %v529 = vld [vmem:[%s6 + $0x10] sm:$0xff]
        %v530 = vld [vmem:[%s6 + $0x18] sm:$0xff]
        %vm531 = vcmask 64512
        %v533 = vsel %vm531, %v527, 0
        %v536 = vsel %vm531, %v528, 0
        %v539 = vsel %vm531, %v529, 0
        %v542 = vsel %vm531, %v530, 0
        %544 = vmatprep.subr.mxu0 %v521
        %545 = vmatpush1.msra.mxu0 %v520
        %546 = vmatprep.subr.mxu0 0.0
        %547 = vmatpush1.msra.mxu0 0.0
        %548 = vmatprep.subr.mxu0 0.0
        %549 = vmatpush1.msra.mxu0 0.0
        %550 = vmatprep.subr.mxu0 0.0
        %551 = vmatpush1.msra.mxu0 0.0
        %552 = vmatprep.subr.mxu0 0.0
        %553 = vmatpush1.msra.mxu0 0.0
        %554 = vmatprep.subr.mxu0 0.0
        %555 = vmatpush1.msra.mxu0 0.0
        %556 = vmatprep.subr.mxu0 0.0
        %557 = vmatpush1.msra.mxu0 0.0
        %558 = vmatprep.subr.mxu0 0.0
        %559 = vmatpush1.msra.mxu0 0.0
        %560 = vmatprep.subr.mxu0 0.0
        %561 = vmatpush1.msra.mxu0 0.0
        %562 = vmatprep.subr.mxu0 0.0
        %563 = vmatpush1.msra.mxu0 0.0
        %564 = vmatprep.subr.mxu0 0.0
        %565 = vmatpush1.msra.mxu0 0.0
        %566 = vmatprep.subr.mxu0 0.0
        %567 = vmatpush1.msra.mxu0 0.0
        %568 = vmatprep.subr.mxu0 0.0
        %569 = vmatpush1.msra.mxu0 0.0
        %570 = vmatprep.subr.mxu0 0.0
        %571 = vmatpush1.msra.mxu0 0.0
        %572 = vmatprep.subr.mxu0 0.0
        %573 = vmatpush1.msra.mxu0 0.0
        %574 = vmatprep.subr.mxu0 0.0
        %575 = vmatpush1.msra.mxu0 0.0
        %576 = vmatprep.subr.mxu0 0.0
        %577 = vmatpush1.msra.mxu0 0.0
        %578 = vmatprep.subr.mxu0 0.0
        %579 = vmatpush1.msra.mxu0 0.0
        %580 = vmatprep.subr.mxu0 0.0
        %581 = vmatpush1.msra.mxu0 0.0
        %582 = vmatprep.subr.mxu0 0.0
        %583 = vmatpush1.msra.mxu0 0.0
        %584 = vmatprep.subr.mxu0 0.0
        %585 = vmatpush1.msra.mxu0 0.0
        %586 = vmatprep.subr.mxu0 0.0
        %587 = vmatpush1.msra.mxu0 0.0
        %588 = vmatprep.subr.mxu0 0.0
        %589 = vmatpush1.msra.mxu0 0.0
        %590 = vmatprep.subr.mxu0 0.0
        %591 = vmatpush1.msra.mxu0 0.0
        %592 = vmatprep.subr.mxu0 0.0
        %593 = vmatpush1.msra.mxu0 0.0
        %594 = vmatprep.subr.mxu0 0.0
        %595 = vmatpush1.msra.mxu0 0.0
        %596 = vmatprep.subr.mxu0 0.0
        %597 = vmatpush1.msra.mxu0 0.0
        %598 = vmatprep.subr.mxu0 0.0
        %599 = vmatpush1.msra.mxu0 0.0
        %600 = vmatprep.subr.mxu0 0.0
        %601 = vmatpush1.msra.mxu0 0.0
        %602 = vmatprep.subr.mxu0 0.0
        %603 = vmatpush1.msra.mxu0 0.0
        %604 = vmatprep.subr.mxu0 0.0
        %605 = vmatpush1.msra.mxu0 0.0
        %606 = vmatprep.subr.mxu0 0.0
        %607 = vmatpush1.msra.mxu0 0.0
        %608 = vmatprep.mubr.f32.mxu0 0.0
        %609 = vmatmul.mubr.f32.gmra.mrb[0].mxu0 %v533
        %v610 = vpop.f32.mrb[0].mxu0
        %v611 = vadd.f32 0.0, %v610
        %v612 = vpop.f32.mrb[0].mxu0
        %v613 = vadd.f32 0.0, %v612
        %614 = vmatprep.mubr.f32.mxu0 0.0
        %615 = vmatmul.mubr.f32.gmra.mrb[0].mxu0 %v536
        %v616 = vpop.f32.mrb[0].mxu0
        %v617 = vadd.f32 0.0, %v616
        %v618 = vpop.f32.mrb[0].mxu0
        %v619 = vadd.f32 0.0, %v618
        %620 = vmatprep.mubr.f32.mxu0 0.0
        %621 = vmatmul.mubr.f32.gmra.mrb[0].mxu0 %v539
        %v622 = vpop.f32.mrb[0].mxu0
        %v623 = vadd.f32 0.0, %v622
        %v624 = vpop.f32.mrb[0].mxu0
        %v625 = vadd.f32 0.0, %v624
        %626 = vmatprep.mubr.f32.mxu0 0.0
        %627 = vmatmul.mubr.f32.gmra.mrb[0].mxu0 %v542
        %v628 = vpop.f32.mrb[0].mxu0
        %v629 = vadd.f32 0.0, %v628
        %v630 = vpop.f32.mrb[0].mxu0
        %v631 = vadd.f32 0.0, %v630
        %632 = vdwg.mxu0
        %v633 = vld [vmem:[%s7] sm:$0xff]
        %v634 = vld [vmem:[%s7 + $0x8] sm:$0xff]
        %v635 = vld [vmem:[%s7 + $0x10] sm:$0xff]
        %v636 = vld [vmem:[%s7 + $0x18] sm:$0xff]
        %v637 = vld [vmem:[%s9] sm:$0xff]
        %v638 = vld [vmem:[%s9 + $0x8] sm:$0xff]
        %v639 = vld [vmem:[%s9 + $0x10] sm:$0xff]
        %v640 = vld [vmem:[%s9 + $0x18] sm:$0xff]
        %v641 = vadd.f32 %v633, %v637
        %v642 = vadd.f32 %v634, %v638
        %v643 = vadd.f32 %v635, %v639
        %v644 = vadd.f32 %v636, %v640
        %v645 = vld [vmem:[%s8] sm:$0xff]
        %v646 = vld [vmem:[%s8 + $0x8] sm:$0xff]
        %v647 = vld [vmem:[%s8 + $0x10] sm:$0xff]
        %v648 = vld [vmem:[%s8 + $0x18] sm:$0xff]
        %v649 = vld [vmem:[%s5] sm:$0xff]
        %v650 = vld [vmem:[%s5 + $0x8] sm:$0xff]
        %v651 = vld [vmem:[%s5 + $0x10] sm:$0xff]
        %v652 = vld [vmem:[%s5 + $0x18] sm:$0xff]
        %v653 = vld [vmem:[%s10] sm:$0xf]
        %v654 = vld [vmem:[%s11] sm:$0xf]
        %v656 = vcombine.high %v526, %v526
        %v658 = vsel %vm440, %v649, 0
        %v661 = vsel %vm440, %v650, 0
        %v664 = vsel %vm440, %v651, 0
        %v667 = vsel %vm440, %v652, 0
        %v669 = vsel %vm444, %v526, 0
        %v671 = vsel %vm444, %v656, 0
        %673 = vmatprep.subr.mxu0 %v671
        %674 = vmatpush1.msra.mxu0 %v669
        %675 = vmatprep.subr.mxu0 0.0
        %676 = vmatpush1.msra.mxu0 0.0
        %677 = vmatprep.subr.mxu0 0.0
        %678 = vmatpush1.msra.mxu0 0.0
        %679 = vmatprep.subr.mxu0 0.0
        %680 = vmatpush1.msra.mxu0 0.0
        %681 = vmatprep.subr.mxu0 0.0
        %682 = vmatpush1.msra.mxu0 0.0
        %683 = vmatprep.subr.mxu0 0.0
        %684 = vmatpush1.msra.mxu0 0.0
        %685 = vmatprep.subr.mxu0 0.0
        %686 = vmatpush1.msra.mxu0 0.0
        %687 = vmatprep.subr.mxu0 0.0
        %688 = vmatpush1.msra.mxu0 0.0
        %689 = vmatprep.subr.mxu0 0.0
        %690 = vmatpush1.msra.mxu0 0.0
        %691 = vmatprep.subr.mxu0 0.0
        %692 = vmatpush1.msra.mxu0 0.0
        %693 = vmatprep.subr.mxu0 0.0
        %694 = vmatpush1.msra.mxu0 0.0
        %695 = vmatprep.subr.mxu0 0.0
        %696 = vmatpush1.msra.mxu0 0.0
        %697 = vmatprep.subr.mxu0 0.0
        %698 = vmatpush1.msra.mxu0 0.0
        %699 = vmatprep.subr.mxu0 0.0
        %700 = vmatpush1.msra.mxu0 0.0
        %701 = vmatprep.subr.mxu0 0.0
        %702 = vmatpush1.msra.mxu0 0.0
        %703 = vmatprep.subr.mxu0 0.0
        %704 = vmatpush1.msra.mxu0 0.0
        %705 = vmatprep.subr.mxu0 0.0
        %706 = vmatpush1.msra.mxu0 0.0
        %707 = vmatprep.subr.mxu0 0.0
        %708 = vmatpush1.msra.mxu0 0.0
        %709 = vmatprep.subr.mxu0 0.0
        %710 = vmatpush1.msra.mxu0 0.0
        %711 = vmatprep.subr.mxu0 0.0
        %712 = vmatpush1.msra.mxu0 0.0
        %713 = vmatprep.subr.mxu0 0.0
        %714 = vmatpush1.msra.mxu0 0.0
        %715 = vmatprep.subr.mxu0 0.0
        %716 = vmatpush1.msra.mxu0 0.0
        %717 = vmatprep.subr.mxu0 0.0
        %718 = vmatpush1.msra.mxu0 0.0
        %719 = vmatprep.subr.mxu0 0.0
        %720 = vmatpush1.msra.mxu0 0.0
        %721 = vmatprep.subr.mxu0 0.0
        %722 = vmatpush1.msra.mxu0 0.0
        %723 = vmatprep.subr.mxu0 0.0
        %724 = vmatpush1.msra.mxu0 0.0
        %725 = vmatprep.subr.mxu0 0.0
        %726 = vmatpush1.msra.mxu0 0.0
        %727 = vmatprep.subr.mxu0 0.0
        %728 = vmatpush1.msra.mxu0 0.0
        %729 = vmatprep.subr.mxu0 0.0
        %730 = vmatpush1.msra.mxu0 0.0
        %731 = vmatprep.subr.mxu0 0.0
        %732 = vmatpush1.msra.mxu0 0.0
        %733 = vmatprep.subr.mxu0 0.0
        %734 = vmatpush1.msra.mxu0 0.0
        %735 = vmatprep.subr.mxu0 0.0
        %736 = vmatpush1.msra.mxu0 0.0
        %737 = vmatprep.mubr.f32.mxu0 0.0
        %738 = vmatmul.mubr.f32.gmra.mrb[0].mxu0 %v658
        %v739 = vpop.f32.mrb[0].mxu0
        %v740 = vadd.f32 %v611, %v739
        %v741 = vpop.f32.mrb[0].mxu0
        %v742 = vadd.f32 %v613, %v741
        %743 = vmatprep.mubr.f32.mxu0 0.0
        %744 = vmatmul.mubr.f32.gmra.mrb[0].mxu0 %v661
        %v745 = vpop.f32.mrb[0].mxu0
        %v746 = vadd.f32 %v617, %v745
        %v747 = vpop.f32.mrb[0].mxu0
        %v748 = vadd.f32 %v619, %v747
        %749 = vmatprep.mubr.f32.mxu0 0.0
        %750 = vmatmul.mubr.f32.gmra.mrb[0].mxu0 %v664
        %v751 = vpop.f32.mrb[0].mxu0
        %v752 = vadd.f32 %v623, %v751
        %v753 = vpop.f32.mrb[0].mxu0
        %v754 = vadd.f32 %v625, %v753
        %755 = vmatprep.mubr.f32.mxu0 0.0
        %756 = vmatmul.mubr.f32.gmra.mrb[0].mxu0 %v667
        %v757 = vpop.f32.mrb[0].mxu0
        %v758 = vadd.f32 %v629, %v757
        %v759 = vpop.f32.mrb[0].mxu0
        %v760 = vadd.f32 %v631, %v759
        %761 = vdwg.mxu0
        %763 = vset.pattern.permute.xlu0 0
        %764 = vperm.xlu0 %763, %v641
        %v765 = vpop.permute.xlu0 %764
        %768 = vset.pattern.permute.xlu0 0
        %769 = vperm.xlu0 %768, %v642
        %v770 = vpop.permute.xlu0 %769
        %773 = vset.pattern.permute.xlu0 0
        %774 = vperm.xlu0 %773, %v643
        %v775 = vpop.permute.xlu0 %774
        %778 = vset.pattern.permute.xlu0 0
        %779 = vperm.xlu0 %778, %v644
        %v780 = vpop.permute.xlu0 %779
        %v782 = vadd.f32 %v740, %v765
        %v783 = vadd.f32 %v742, %v765
        %v784 = vadd.f32 %v746, %v770
        %v785 = vadd.f32 %v748, %v770
        %v786 = vadd.f32 %v752, %v775
        %v787 = vadd.f32 %v754, %v775
        %v788 = vadd.f32 %v758, %v780
        %v789 = vadd.f32 %v760, %v780
        %v790 = vstv %s426
        %v791 = vmul.f32 %v790, %v645
        %v792 = vmul.f32 %v790, %v646
        %v793 = vmul.f32 %v790, %v647
        %v794 = vmul.f32 %v790, %v648
        %796 = vset.pattern.permute.xlu0 0
        %797 = vperm.xlu0 %796, %v791
        %v798 = vpop.permute.xlu0 %797
        %801 = vset.pattern.permute.xlu0 0
        %802 = vperm.xlu0 %801, %v792
        %v803 = vpop.permute.xlu0 %802
        %806 = vset.pattern.permute.xlu0 0
        %807 = vperm.xlu0 %806, %v793
        %v808 = vpop.permute.xlu0 %807
        %811 = vset.pattern.permute.xlu0 0
        %812 = vperm.xlu0 %811, %v794
        %v813 = vpop.permute.xlu0 %812
        %v815 = vadd.f32 %v782, %v798
        %v816 = vadd.f32 %v783, %v798
        %v817 = vadd.f32 %v784, %v803
        %v818 = vadd.f32 %v785, %v803
        %v819 = vadd.f32 %v786, %v808
        %v820 = vadd.f32 %v787, %v808
        %v821 = vadd.f32 %v788, %v813
        %v822 = vadd.f32 %v789, %v813
        %v823 = vmax.f32 %v815, 0.0
        %v824 = vmax.f32 %v816, 0.0
        %v825 = vmax.f32 %v817, 0.0
        %v826 = vmax.f32 %v818, 0.0
        %v827 = vmax.f32 %v819, 0.0
        %v828 = vmax.f32 %v820, 0.0
        %v829 = vmax.f32 %v821, 0.0
        %v830 = vmax.f32 %v822, 0.0
        %832 = vset.pattern.permute.xlu0 0
        %833 = vperm.xlu0 %832, %v654
        %v834 = vpop.permute.xlu0 %833
        %vm836 = vcmask 261120
        %v838 = vsel %vm836, %v653, 0
        %840 = vmatprep.subr.mxu0 %v824
        %841 = vmatpush1.msra.mxu0 %v823
        %842 = vmatprep.subr.mxu0 %v826
        %843 = vmatpush1.msra.mxu0 %v825
        %844 = vmatprep.subr.mxu0 %v828
        %845 = vmatpush1.msra.mxu0 %v827
        %846 = vmatprep.subr.mxu0 %v830
        %847 = vmatpush1.msra.mxu0 %v829
        %848 = vmatprep.subr.mxu0 0.0
        %849 = vmatpush1.msra.mxu0 0.0
        %850 = vmatprep.subr.mxu0 0.0
        %851 = vmatpush1.msra.mxu0 0.0
        %852 = vmatprep.subr.mxu0 0.0
        %853 = vmatpush1.msra.mxu0 0.0
        %854 = vmatprep.subr.mxu0 0.0
        %855 = vmatpush1.msra.mxu0 0.0
        %856 = vmatprep.subr.mxu0 0.0
        %857 = vmatpush1.msra.mxu0 0.0
        %858 = vmatprep.subr.mxu0 0.0
        %859 = vmatpush1.msra.mxu0 0.0
        %860 = vmatprep.subr.mxu0 0.0
        %861 = vmatpush1.msra.mxu0 0.0
        %862 = vmatprep.subr.mxu0 0.0
        %863 = vmatpush1.msra.mxu0 0.0
        %864 = vmatprep.subr.mxu0 0.0
        %865 = vmatpush1.msra.mxu0 0.0
        %866 = vmatprep.subr.mxu0 0.0
        %867 = vmatpush1.msra.mxu0 0.0
        %868 = vmatprep.subr.mxu0 0.0
        %869 = vmatpush1.msra.mxu0 0.0
        %870 = vmatprep.subr.mxu0 0.0
        %871 = vmatpush1.msra.mxu0 0.0
        %872 = vmatprep.subr.mxu0 0.0
        %873 = vmatpush1.msra.mxu0 0.0
        %874 = vmatprep.subr.mxu0 0.0
        %875 = vmatpush1.msra.mxu0 0.0
        %876 = vmatprep.subr.mxu0 0.0
        %877 = vmatpush1.msra.mxu0 0.0
        %878 = vmatprep.subr.mxu0 0.0
        %879 = vmatpush1.msra.mxu0 0.0
        %880 = vmatprep.subr.mxu0 0.0
        %881 = vmatpush1.msra.mxu0 0.0
        %882 = vmatprep.subr.mxu0 0.0
        %883 = vmatpush1.msra.mxu0 0.0
        %884 = vmatprep.subr.mxu0 0.0
        %885 = vmatpush1.msra.mxu0 0.0
        %886 = vmatprep.subr.mxu0 0.0
        %887 = vmatpush1.msra.mxu0 0.0
        %888 = vmatprep.subr.mxu0 0.0
        %889 = vmatpush1.msra.mxu0 0.0
        %890 = vmatprep.subr.mxu0 0.0
        %891 = vmatpush1.msra.mxu0 0.0
        %892 = vmatprep.subr.mxu0 0.0
        %893 = vmatpush1.msra.mxu0 0.0
        %894 = vmatprep.subr.mxu0 0.0
        %895 = vmatpush1.msra.mxu0 0.0
        %896 = vmatprep.subr.mxu0 0.0
        %897 = vmatpush1.msra.mxu0 0.0
        %898 = vmatprep.subr.mxu0 0.0
        %899 = vmatpush1.msra.mxu0 0.0
        %900 = vmatprep.subr.mxu0 0.0
        %901 = vmatpush1.msra.mxu0 0.0
        %902 = vmatprep.subr.mxu0 0.0
        %903 = vmatpush1.msra.mxu0 0.0
        %904 = vmatprep.mubr.f32.mxu0 0.0
        %905 = vmatmul.mubr.f32.gmra.mrb[0].mxu0 %v838
        %v906 = vpop.f32.mrb[0].mxu0
        %v907 = vadd.f32 %v834, %v906
        %v908 = vpop.f32.mrb[0].mxu0
        %v909 = vadd.f32 %v834, %v908
        %910 = vdwg.mxu0
        %v911 = vstv %s428
        %v912 = vmul.f32 %v911, %v645
        %v913 = vmul.f32 %v911, %v646
        %v914 = vmul.f32 %v911, %v647
        %v915 = vmul.f32 %v911, %v648
        %917 = vset.pattern.permute.xlu0 0
        %918 = vperm.xlu0 %917, %v912
        %v919 = vpop.permute.xlu0 %918
        %922 = vset.pattern.permute.xlu0 0
        %923 = vperm.xlu0 %922, %v913
        %v924 = vpop.permute.xlu0 %923
        %927 = vset.pattern.permute.xlu0 0
        %928 = vperm.xlu0 %927, %v914
        %v929 = vpop.permute.xlu0 %928
        %932 = vset.pattern.permute.xlu0 0
        %933 = vperm.xlu0 %932, %v915
        %v934 = vpop.permute.xlu0 %933
        %v936 = vadd.f32 %v782, %v919
        %v937 = vadd.f32 %v783, %v919
        %v938 = vadd.f32 %v784, %v924
        %v939 = vadd.f32 %v785, %v924
        %v940 = vadd.f32 %v786, %v929
        %v941 = vadd.f32 %v787, %v929
        %v942 = vadd.f32 %v788, %v934
        %v943 = vadd.f32 %v789, %v934
        %v944 = vmax.f32 %v936, 0.0
        %v945 = vmax.f32 %v937, 0.0
        %v946 = vmax.f32 %v938, 0.0
        %v947 = vmax.f32 %v939, 0.0
        %v948 = vmax.f32 %v940, 0.0
        %v949 = vmax.f32 %v941, 0.0
        %v950 = vmax.f32 %v942, 0.0
        %v951 = vmax.f32 %v943, 0.0
        %952 = vmatprep.subr.mxu0 %v945
        %953 = vmatpush1.msra.mxu0 %v944
        %954 = vmatprep.subr.mxu0 %v947
        %955 = vmatpush1.msra.mxu0 %v946
        %956 = vmatprep.subr.mxu0 %v949
        %957 = vmatpush1.msra.mxu0 %v948
        %958 = vmatprep.subr.mxu0 %v951
        %959 = vmatpush1.msra.mxu0 %v950
        %960 = vmatprep.subr.mxu0 0.0
        %961 = vmatpush1.msra.mxu0 0.0
        %962 = vmatprep.subr.mxu0 0.0
        %963 = vmatpush1.msra.mxu0 0.0
        %964 = vmatprep.subr.mxu0 0.0
        %965 = vmatpush1.msra.mxu0 0.0
        %966 = vmatprep.subr.mxu0 0.0
        %967 = vmatpush1.msra.mxu0 0.0
        %968 = vmatprep.subr.mxu0 0.0
        %969 = vmatpush1.msra.mxu0 0.0
        %970 = vmatprep.subr.mxu0 0.0
        %971 = vmatpush1.msra.mxu0 0.0
        %972 = vmatprep.subr.mxu0 0.0
        %973 = vmatpush1.msra.mxu0 0.0
        %974 = vmatprep.subr.mxu0 0.0
        %975 = vmatpush1.msra.mxu0 0.0
        %976 = vmatprep.subr.mxu0 0.0
        %977 = vmatpush1.msra.mxu0 0.0
        %978 = vmatprep.subr.mxu0 0.0
        %979 = vmatpush1.msra.mxu0 0.0
        %980 = vmatprep.subr.mxu0 0.0
        %981 = vmatpush1.msra.mxu0 0.0
        %982 = vmatprep.subr.mxu0 0.0
        %983 = vmatpush1.msra.mxu0 0.0
        %984 = vmatprep.subr.mxu0 0.0
        %985 = vmatpush1.msra.mxu0 0.0
        %986 = vmatprep.subr.mxu0 0.0
        %987 = vmatpush1.msra.mxu0 0.0
        %988 = vmatprep.subr.mxu0 0.0
        %989 = vmatpush1.msra.mxu0 0.0
        %990 = vmatprep.subr.mxu0 0.0
        %991 = vmatpush1.msra.mxu0 0.0
        %992 = vmatprep.subr.mxu0 0.0
        %993 = vmatpush1.msra.mxu0 0.0
        %994 = vmatprep.subr.mxu0 0.0
        %995 = vmatpush1.msra.mxu0 0.0
        %996 = vmatprep.subr.mxu0 0.0
        %997 = vmatpush1.msra.mxu0 0.0
        %998 = vmatprep.subr.mxu0 0.0
        %999 = vmatpush1.msra.mxu0 0.0
        %1000 = vmatprep.subr.mxu0 0.0
        %1001 = vmatpush1.msra.mxu0 0.0
        %1002 = vmatprep.subr.mxu0 0.0
        %1003 = vmatpush1.msra.mxu0 0.0
        %1004 = vmatprep.subr.mxu0 0.0
        %1005 = vmatpush1.msra.mxu0 0.0
        %1006 = vmatprep.subr.mxu0 0.0
        %1007 = vmatpush1.msra.mxu0 0.0
        %1008 = vmatprep.subr.mxu0 0.0
        %1009 = vmatpush1.msra.mxu0 0.0
        %1010 = vmatprep.subr.mxu0 0.0
        %1011 = vmatpush1.msra.mxu0 0.0
        %1012 = vmatprep.subr.mxu0 0.0
        %1013 = vmatpush1.msra.mxu0 0.0
        %1014 = vmatprep.subr.mxu0 0.0
        %1015 = vmatpush1.msra.mxu0 0.0
        %1016 = vmatprep.mubr.f32.mxu0 0.0
        %1017 = vmatmul.mubr.f32.gmra.mrb[0].mxu0 %v838
        %v1018 = vpop.f32.mrb[0].mxu0
        %v1019 = vadd.f32 %v834, %v1018
        %v1020 = vpop.f32.mrb[0].mxu0
        %v1021 = vadd.f32 %v834, %v1020
        %1022 = vdwg.mxu0
        %v1023 = vstv %s418
        %v1024 = vmul.f32 %v1023, %v526
        %v1025 = vstv %s420
        %v1026 = vmul.f32 %v1025, %v1019
        %v1027 = vmul.f32 %v1025, %v1021
        %v1030 = vcombine.low %v1026, %v1027
        %v1032 = vsub.f32 %v1024, %v1030
        %v1033 = vmax.f32 %v1032, -1.0
        %v1034 = vmin.f32 %v1033, 1.0
        %v1035 = vstv %s422
        %v1036 = vmul.f32 %v1035, %v1034
        %v1037 = vstv %s424
        %v1038 = vmul.f32 %v1037, %v1019
        %v1039 = vmul.f32 %v1037, %v1021
        %v1042 = vcombine.low %v1038, %v1039
        %v1044 = vadd.f32 %v1036, %v1042
        %v1046 = vcombine.high %v1044, %v1044
        %v1047 = vsel %vm444, %v1044, 0
        %v1049 = vsel %vm444, %v1046, 0
        %1051 = vmatprep.subr.mxu0 %v1049
        %1052 = vmatpush1.msra.mxu0 %v1047
        %1053 = vmatprep.subr.mxu0 0.0
        %1054 = vmatpush1.msra.mxu0 0.0
        %1055 = vmatprep.subr.mxu0 0.0
        %1056 = vmatpush1.msra.mxu0 0.0
        %1057 = vmatprep.subr.mxu0 0.0
        %1058 = vmatpush1.msra.mxu0 0.0
        %1059 = vmatprep.subr.mxu0 0.0
        %1060 = vmatpush1.msra.mxu0 0.0
        %1061 = vmatprep.subr.mxu0 0.0
        %1062 = vmatpush1.msra.mxu0 0.0
        %1063 = vmatprep.subr.mxu0 0.0
        %1064 = vmatpush1.msra.mxu0 0.0
        %1065 = vmatprep.subr.mxu0 0.0
        %1066 = vmatpush1.msra.mxu0 0.0
        %1067 = vmatprep.subr.mxu0 0.0
        %1068 = vmatpush1.msra.mxu0 0.0
        %1069 = vmatprep.subr.mxu0 0.0
        %1070 = vmatpush1.msra.mxu0 0.0
        %1071 = vmatprep.subr.mxu0 0.0
        %1072 = vmatpush1.msra.mxu0 0.0
        %1073 = vmatprep.subr.mxu0 0.0
        %1074 = vmatpush1.msra.mxu0 0.0
        %1075 = vmatprep.subr.mxu0 0.0
        %1076 = vmatpush1.msra.mxu0 0.0
        %1077 = vmatprep.subr.mxu0 0.0
        %1078 = vmatpush1.msra.mxu0 0.0
        %1079 = vmatprep.subr.mxu0 0.0
        %1080 = vmatpush1.msra.mxu0 0.0
        %1081 = vmatprep.subr.mxu0 0.0
        %1082 = vmatpush1.msra.mxu0 0.0
        %1083 = vmatprep.subr.mxu0 0.0
        %1084 = vmatpush1.msra.mxu0 0.0
        %1085 = vmatprep.subr.mxu0 0.0
        %1086 = vmatpush1.msra.mxu0 0.0
        %1087 = vmatprep.subr.mxu0 0.0
        %1088 = vmatpush1.msra.mxu0 0.0
        %1089 = vmatprep.subr.mxu0 0.0
        %1090 = vmatpush1.msra.mxu0 0.0
        %1091 = vmatprep.subr.mxu0 0.0
        %1092 = vmatpush1.msra.mxu0 0.0
        %1093 = vmatprep.subr.mxu0 0.0
        %1094 = vmatpush1.msra.mxu0 0.0
        %1095 = vmatprep.subr.mxu0 0.0
        %1096 = vmatpush1.msra.mxu0 0.0
        %1097 = vmatprep.subr.mxu0 0.0
        %1098 = vmatpush1.msra.mxu0 0.0
        %1099 = vmatprep.subr.mxu0 0.0
        %1100 = vmatpush1.msra.mxu0 0.0
        %1101 = vmatprep.subr.mxu0 0.0
        %1102 = vmatpush1.msra.mxu0 0.0
        %1103 = vmatprep.subr.mxu0 0.0
        %1104 = vmatpush1.msra.mxu0 0.0
        %1105 = vmatprep.subr.mxu0 0.0
        %1106 = vmatpush1.msra.mxu0 0.0
        %1107 = vmatprep.subr.mxu0 0.0
        %1108 = vmatpush1.msra.mxu0 0.0
        %1109 = vmatprep.subr.mxu0 0.0
        %1110 = vmatpush1.msra.mxu0 0.0
        %1111 = vmatprep.subr.mxu0 0.0
        %1112 = vmatpush1.msra.mxu0 0.0
        %1113 = vmatprep.subr.mxu0 0.0
        %1114 = vmatpush1.msra.mxu0 0.0
        %1115 = vmatprep.mubr.f32.mxu0 0.0
        %1116 = vmatmul.mubr.f32.gmra.mrb[0].mxu0 %v658
        %v1117 = vpop.f32.mrb[0].mxu0
        %v1118 = vadd.f32 %v611, %v1117
        %v1119 = vpop.f32.mrb[0].mxu0
        %v1120 = vadd.f32 %v613, %v1119
        %1121 = vmatprep.mubr.f32.mxu0 0.0
        %1122 = vmatmul.mubr.f32.gmra.mrb[0].mxu0 %v661
        %v1123 = vpop.f32.mrb[0].mxu0
        %v1124 = vadd.f32 %v617, %v1123
        %v1125 = vpop.f32.mrb[0].mxu0
        %v1126 = vadd.f32 %v619, %v1125
        %1127 = vmatprep.mubr.f32.mxu0 0.0
        %1128 = vmatmul.mubr.f32.gmra.mrb[0].mxu0 %v664
        %v1129 = vpop.f32.mrb[0].mxu0
        %v1130 = vadd.f32 %v623, %v1129
        %v1131 = vpop.f32.mrb[0].mxu0
        %v1132 = vadd.f32 %v625, %v1131
        %1133 = vmatprep.mubr.f32.mxu0 0.0
        %1134 = vmatmul.mubr.f32.gmra.mrb[0].mxu0 %v667
        %v1135 = vpop.f32.mrb[0].mxu0
        %v1136 = vadd.f32 %v629, %v1135
        %v1137 = vpop.f32.mrb[0].mxu0
        %v1138 = vadd.f32 %v631, %v1137
        %1139 = vdwg.mxu0
        %v1140 = vadd.f32 %v1118, %v765
        %v1141 = vadd.f32 %v1120, %v765
        %v1142 = vadd.f32 %v1124, %v770
        %v1143 = vadd.f32 %v1126, %v770
        %v1144 = vadd.f32 %v1130, %v775
        %v1145 = vadd.f32 %v1132, %v775
        %v1146 = vadd.f32 %v1136, %v780
        %v1147 = vadd.f32 %v1138, %v780
        %v1148 = vstv %s430
        %v1149 = vmul.f32 %v1148, %v645
        %v1150 = vmul.f32 %v1148, %v646
        %v1151 = vmul.f32 %v1148, %v647
        %v1152 = vmul.f32 %v1148, %v648
        %1154 = vset.pattern.permute.xlu0 0
        %1155 = vperm.xlu0 %1154, %v1149
        %v1156 = vpop.permute.xlu0 %1155
        %1159 = vset.pattern.permute.xlu0 0
        %1160 = vperm.xlu0 %1159, %v1150
        %v1161 = vpop.permute.xlu0 %1160
        %1164 = vset.pattern.permute.xlu0 0
        %1165 = vperm.xlu0 %1164, %v1151
        %v1166 = vpop.permute.xlu0 %1165
        %1169 = vset.pattern.permute.xlu0 0
        %1170 = vperm.xlu0 %1169, %v1152
        %v1171 = vpop.permute.xlu0 %1170
        %v1173 = vadd.f32 %v1140, %v1156
        %v1174 = vadd.f32 %v1141, %v1156
        %v1175 = vadd.f32 %v1142, %v1161
        %v1176 = vadd.f32 %v1143, %v1161
        %v1177 = vadd.f32 %v1144, %v1166
        %v1178 = vadd.f32 %v1145, %v1166
        %v1179 = vadd.f32 %v1146, %v1171
        %v1180 = vadd.f32 %v1147, %v1171
        %v1181 = vmax.f32 %v1173, 0.0
        %v1182 = vmax.f32 %v1174, 0.0
        %v1183 = vmax.f32 %v1175, 0.0
        %v1184 = vmax.f32 %v1176, 0.0
        %v1185 = vmax.f32 %v1177, 0.0
        %v1186 = vmax.f32 %v1178, 0.0
        %v1187 = vmax.f32 %v1179, 0.0
        %v1188 = vmax.f32 %v1180, 0.0
        %1189 = vmatprep.subr.mxu0 %v1182
        %1190 = vmatpush1.msra.mxu0 %v1181
        %1191 = vmatprep.subr.mxu0 %v1184
        %1192 = vmatpush1.msra.mxu0 %v1183
        %1193 = vmatprep.subr.mxu0 %v1186
        %1194 = vmatpush1.msra.mxu0 %v1185
        %1195 = vmatprep.subr.mxu0 %v1188
        %1196 = vmatpush1.msra.mxu0 %v1187
        %1197 = vmatprep.subr.mxu0 0.0
        %1198 = vmatpush1.msra.mxu0 0.0
        %1199 = vmatprep.subr.mxu0 0.0
        %1200 = vmatpush1.msra.mxu0 0.0
        %1201 = vmatprep.subr.mxu0 0.0
        %1202 = vmatpush1.msra.mxu0 0.0
        %1203 = vmatprep.subr.mxu0 0.0
        %1204 = vmatpush1.msra.mxu0 0.0
        %1205 = vmatprep.subr.mxu0 0.0
        %1206 = vmatpush1.msra.mxu0 0.0
        %1207 = vmatprep.subr.mxu0 0.0
        %1208 = vmatpush1.msra.mxu0 0.0
        %1209 = vmatprep.subr.mxu0 0.0
        %1210 = vmatpush1.msra.mxu0 0.0
        %1211 = vmatprep.subr.mxu0 0.0
        %1212 = vmatpush1.msra.mxu0 0.0
        %1213 = vmatprep.subr.mxu0 0.0
        %1214 = vmatpush1.msra.mxu0 0.0
        %1215 = vmatprep.subr.mxu0 0.0
        %1216 = vmatpush1.msra.mxu0 0.0
        %1217 = vmatprep.subr.mxu0 0.0
        %1218 = vmatpush1.msra.mxu0 0.0
        %1219 = vmatprep.subr.mxu0 0.0
        %1220 = vmatpush1.msra.mxu0 0.0
        %1221 = vmatprep.subr.mxu0 0.0
        %1222 = vmatpush1.msra.mxu0 0.0
        %1223 = vmatprep.subr.mxu0 0.0
        %1224 = vmatpush1.msra.mxu0 0.0
        %1225 = vmatprep.subr.mxu0 0.0
        %1226 = vmatpush1.msra.mxu0 0.0
        %1227 = vmatprep.subr.mxu0 0.0
        %1228 = vmatpush1.msra.mxu0 0.0
        %1229 = vmatprep.subr.mxu0 0.0
        %1230 = vmatpush1.msra.mxu0 0.0
        %1231 = vmatprep.subr.mxu0 0.0
        %1232 = vmatpush1.msra.mxu0 0.0
        %1233 = vmatprep.subr.mxu0 0.0
        %1234 = vmatpush1.msra.mxu0 0.0
        %1235 = vmatprep.subr.mxu0 0.0
        %1236 = vmatpush1.msra.mxu0 0.0
        %1237 = vmatprep.subr.mxu0 0.0
        %1238 = vmatpush1.msra.mxu0 0.0
        %1239 = vmatprep.subr.mxu0 0.0
        %1240 = vmatpush1.msra.mxu0 0.0
        %1241 = vmatprep.subr.mxu0 0.0
        %1242 = vmatpush1.msra.mxu0 0.0
        %1243 = vmatprep.subr.mxu0 0.0
        %1244 = vmatpush1.msra.mxu0 0.0
        %1245 = vmatprep.subr.mxu0 0.0
        %1246 = vmatpush1.msra.mxu0 0.0
        %1247 = vmatprep.subr.mxu0 0.0
        %1248 = vmatpush1.msra.mxu0 0.0
        %1249 = vmatprep.subr.mxu0 0.0
        %1250 = vmatpush1.msra.mxu0 0.0
        %1251 = vmatprep.subr.mxu0 0.0
        %1252 = vmatpush1.msra.mxu0 0.0
        %1253 = vmatprep.mubr.f32.mxu0 0.0
        %1254 = vmatmul.mubr.f32.gmra.mrb[0].mxu0 %v838
        %v1255 = vpop.f32.mrb[0].mxu0
        %v1256 = vadd.f32 %v834, %v1255
        %v1257 = vpop.f32.mrb[0].mxu0
        %v1258 = vadd.f32 %v834, %v1257
        %1259 = vdwg.mxu0
        %v1260 = vsub.f32 %v1256, %v907
        %v1261 = vsub.f32 %v1258, %v909
        %v1262 = vand.u32 2147483647, %v1260
        %v1263 = vand.u32 2147483647, %v1261
        %v1264 = vsel %vm444, %v1262, 0.0
        %v1265 = vsel %vm444, %v1263, 0.0
        %v1266 = vadd.f32 %v1264, %v1265
        %1267 = vadd.xlane.f32.xlu0 %v1266
        %v1268 = vpop.xlane.xlu0 %1267
        %v1269 = vrot.slane %v1268, 4
        %v1270 = vadd.f32 %v1268, %v1269
        %v1271 = vrot.slane %v1270, 2
        %v1272 = vadd.f32 %v1270, %v1271
        %v1273 = vrot.slane %v1272, 1
        %v1274 = vadd.f32 %v1272, %v1273
        %s1275 = vtos %v1274
        %v1276 = vrcp.pop 1024.0
        %s1277 = vtos %v1276
        %s1278 = smul.f32 %s1275, %s1277
        %v1279 = vstv %s1278
        %1280 = vst [vmem:[%s400] sm:$0x1] %v1279
        %s1281 = sand.u32 %s281, 1
        %s1282 = scalar_lea.sflag [#allocation5], %s1281
        %s1283 = sand.u32 %s281, 1
        %s1284 = scalar_lea.vmem [#allocation4], %s1283
        // Predicated region
        $region65: #{tpu_custom_call.1} parent=63 // pred_check
          %p1285 = pneg %p291
        $region66: #{tpu_custom_call.1} parent=63 // pred_check_branch
          %1287 = sbr.rel (%p1285) target = $region68
        $region67: #{tpu_custom_call.1} parent=63 // pred_region
          %s1289 = ssub.s32 16, 16
          %1290 = vsyncadd %s1282, %s1289
          %s1291 = smul.addr %s32, 16
          %s1292 = scalar_lea.hbm %s12, %s1291
          %s1294 = sshll.u32 %s1284, 4
          %s1295 = int_to_ptr.vmem [resolvable:$true] %s1294
          %1297 = dma.vmem_to_hbm [thread:$0]  %s1295, 16, %s1292, %s1282
        $region68: #{tpu_custom_call.1} parent=63 // pred_fallthru
          _
      $region64: #{tpu_custom_call.1} parent=5 // pred_fallthru
        _
      %p1298 = scmp.le.s32.totalorder 2, %s27
      // Predicated region
      $region69: #{tpu_custom_call.1} parent=5 // pred_check
        %p1299 = pneg %p1298
      $region70: #{tpu_custom_call.1} parent=5 // pred_check_branch
        %1301 = sbr.rel (%p1299) target = $region72
      $region71: #{tpu_custom_call.1} parent=5 // pred_region
        %s1302 = ssub.s32 %s27, 2
        // Predicated region
        $region73: #{tpu_custom_call.1} parent=71 // pred_check
          %p1303 = pneg %p297
        $region74: #{tpu_custom_call.1} parent=71 // pred_check_branch
          %1305 = sbr.rel (%p1303) target = $region76
        $region75: #{tpu_custom_call.1} parent=71 // pred_region
          %s1306 = sand.u32 %s282, 1
          %s1307 = scalar_lea.sflag [#allocation5], %s1306
          %s1308 = sand.u32 %s282, 1
          %s1309 = scalar_lea.vmem [#allocation4], %s1308
          %1310 = dma.done %s1307, 16
        $region76: #{tpu_custom_call.1} parent=71 // pred_fallthru
          _
      $region72: #{tpu_custom_call.1} parent=5 // pred_fallthru
        _
    $region6: #{tpu_custom_call.1} parent=1 // loop_footer
      %s31 = sadd.s32 1, %s27
    $region7: #{tpu_custom_call.1} parent=1 // loop_footer_branch
      %26 = sbr.rel target = $region3
    $region8: #{tpu_custom_call.1} parent=1 // loop_exit
      _
    %1311 = vsyncpa [#allocation5], 1
    %s1312 = scalar_lea.sflag [#allocation5], 1
    %1313 = vsyncpa %s1312, 1

</llo_original>
